<compile_context>
chip_gen: v6e
topology: v6e:2x2x1
jax: 0.10.0
libtpu: 0.0.40
codegen_flags: <defaults>
</compile_context>

<pallas_src>
import functools

import jax
import jax.numpy as jnp
from jax.experimental import pallas as pl
from jax.experimental.pallas import tpu as pltpu


def _round_up(x, m):
    return ((x + m - 1) // m) * m


def _pixel_embedding_kernel(idx_ref, table_ref, out_ref):
    # idx_ref:   (TN, 1)    int32   token indices for this tile
    # table_ref: (C, V, H)  bf16    table chunks (lo..hi), VMEM-resident
    # out_ref:   (TN, H)            dtype of the original table
    tn = idx_ref.shape[0]
    n_chunks, n_tokens, _ = table_ref.shape

    idx = idx_ref[...]                                             # (TN, 1)
    token_ids = jax.lax.broadcasted_iota(jnp.int32, (tn, n_tokens), 1)
    # One-hot entries are exactly representable in bf16 (0.0 / 1.0).
    onehot = (idx == token_ids).astype(jnp.bfloat16)               # (TN, V)

    # Row gather as single-pass bf16 MXU matmuls (one per table chunk),
    # accumulated in f32.  Summed small->large chunk for best reconstruction.
    acc = jnp.dot(onehot, table_ref[0], preferred_element_type=jnp.float32)
    for c in range(1, n_chunks):                                   # static loop (1 or 3)
        acc = acc + jnp.dot(onehot, table_ref[c],
                            preferred_element_type=jnp.float32)
    out_ref[...] = acc.astype(out_ref.dtype)


def _split_f32_to_bf16_chunks(table_f32):
    """Exact 3-way bf16 split of an f32 table: table == lo + mid + hi (f32)."""
    hi = table_f32.astype(jnp.bfloat16)
    r1 = table_f32 - hi.astype(jnp.float32)       # exact (Sterbenz)
    mid = r1.astype(jnp.bfloat16)
    r2 = r1 - mid.astype(jnp.float32)             # exact
    lo = r2.astype(jnp.bfloat16)
    return jnp.stack([lo, mid, hi])               # (3, V, H) bf16


@functools.partial(jax.jit, static_argnames=("block_n",))
def pixel_embedding(x, embedding_table, *, block_n=1024):
    """Pallas forward equivalent to PixelEmbedding.forward(x).

    Args:
      x: integer tensor of token indices, arbitrary shape (e.g. (B, H, W)).
      embedding_table: (n_tokens, hidden_size) embedding weights (f32 or bf16).
      block_n: max tokens per grid step (multiple of 8; 512-2048 reasonable).
    Returns:
      x.shape + (hidden_size,) embeddings in the table's dtype.
    """
    n_tokens, hidden = embedding_table.shape
    orig_shape = x.shape
    out_dtype = embedding_table.dtype

    if embedding_table.dtype == jnp.bfloat16:
        table_chunks = embedding_table[None]                       # (1, V, H), exact single pass
    else:
        table_chunks = _split_f32_to_bf16_chunks(
            embedding_table.astype(jnp.float32))                   # (3, V, H)
    n_chunks = table_chunks.shape[0]

    idx = x.reshape(-1).astype(jnp.int32)
    n = idx.shape[0]

    # Clamp the tile to the (8-rounded) token count so small inputs run in one
    # grid step without padding; large inputs get big lane/sublane-dense tiles.
    block_n_eff = _round_up(min(block_n, _round_up(n, 8)), 8)
    n_tiles = pl.cdiv(n, block_n_eff)
    n_pad = n_tiles * block_n_eff
    if n_pad != n:
        idx = jnp.pad(idx, (0, n_pad - n))        # padded rows gather row 0
    idx2 = idx.reshape(n_pad, 1)

    out = pl.pallas_call(
        _pixel_embedding_kernel,
        out_shape=jax.ShapeDtypeStruct((n_pad, hidden), out_dtype),
        grid=(n_tiles,),
        in_specs=[
            pl.BlockSpec((block_n_eff, 1), lambda i: (i, 0)),               # indices
            pl.BlockSpec((n_chunks, n_tokens, hidden), lambda i: (0, 0, 0)),  # resident table
        ],
        out_specs=pl.BlockSpec((block_n_eff, hidden), lambda i: (i, 0)),
        compiler_params=pltpu.CompilerParams(
            dimension_semantics=("parallel",)),
    )(idx2, table_chunks)

    if n_pad != n:
        out = out[:n]
    return out.reshape(*orig_shape, hidden)


def _reference(x, embedding_table):
    """Pure-JAX reference mirroring torch.nn.Embedding lookup."""
    return jnp.take(embedding_table, x.astype(jnp.int32), axis=0)


if __name__ == "__main__":
    n_tokens = 256      # pixel values
    hidden = 128        # lane-dense hidden size
    B, Himg, Wimg = 2, 16, 16

    key = jax.random.PRNGKey(0)
    k_x, k_w = jax.random.split(key)

    x = jax.random.randint(k_x, (B, Himg, Wimg), 0, n_tokens, dtype=jnp.int32)
    # nn.Embedding default init is N(0, 1).
    table = jax.random.normal(k_w, (n_tokens, hidden), jnp.float32)

    out = jax.block_until_ready(pixel_embedding(x, table))
    ref = _reference(x, table)
    assert out.shape == (B, Himg, Wimg, hidden), out.shape
    assert out.dtype == table.dtype, out.dtype
    assert jnp.allclose(out, ref, atol=1e-4, rtol=1e-4), (
        float(jnp.max(jnp.abs(out - ref))))

    # Secondary check: bf16 table (single exact MXU pass) and a token count
    # that is not a multiple of the tile (exercises the pad / unpad path).
    x2 = jax.random.randint(k_x, (2, 7, 9), 0, n_tokens, dtype=jnp.int32)
    table_bf16 = table.astype(jnp.bfloat16)
    out2 = jax.block_until_ready(pixel_embedding(x2, table_bf16))
    ref2 = _reference(x2, table_bf16)
    assert out2.shape == (2, 7, 9, hidden), out2.shape
    assert jnp.allclose(out2.astype(jnp.float32), ref2.astype(jnp.float32),
                        atol=1e-2, rtol=1e-2)

    print("KERNEL_OK")
</pallas_src>

<mosaic_0001>
module attributes {stable_mosaic.version = 11 : i64} {
  func.func @_pixel_embedding_kernel(%arg0: i32, %arg1: memref<512x1xi32, #tpu.memory_space<vmem>>, %arg2: memref<3x256x128xbf16, #tpu.memory_space<vmem>>, %arg3: memref<512x128xf32, #tpu.memory_space<vmem>>) attributes {dimension_semantics = [#tpu.dimension_semantics<parallel>], iteration_bounds = array<i64: 1>, scalar_prefetch = 0 : i64, scratch_operands = 0 : i64, tpu.core_type = #tpu.core_type<tc>, window_params = [{transform_indices = @transform_0, window_bounds = array<i64: 512, 1>}, {pipeline_mode = #tpu.pipeline_mode<synchronous>, transform_indices = @transform_1, window_bounds = array<i64: 3, 256, 128>}, {transform_indices = @transform_2, window_bounds = array<i64: 512, 128>}]} {
    %c0 = arith.constant 0 : index
    %c0_0 = arith.constant 0 : index
    %0 = vector.load %arg1[%c0, %c0_0] : memref<512x1xi32, #tpu.memory_space<vmem>>, vector<512x1xi32>
    %1 = tpu.iota {dimensions = array<i32: 1>} : vector<512x256xi32>
    %2 = vector.broadcast %0 : vector<512x1xi32> to vector<512x256xi32>
    %3 = arith.cmpi eq, %2, %1 : vector<512x256xi32>
    %4 = arith.extui %3 : vector<512x256xi1> to vector<512x256xi32>
    %5 = arith.sitofp %4 : vector<512x256xi32> to vector<512x256xf32>
    %6 = arith.truncf %5 : vector<512x256xf32> to vector<512x256xbf16>
    %c0_1 = arith.constant 0 : index
    %c0_2 = arith.constant 0 : index
    %c0_3 = arith.constant 0 : index
    %7 = vector.load %arg2[%c0_1, %c0_2, %c0_3] : memref<3x256x128xbf16, #tpu.memory_space<vmem>>, vector<1x256x128xbf16>
    %8 = vector.shape_cast %7 : vector<1x256x128xbf16> to vector<256x128xbf16>
    %cst = arith.constant dense<0.000000e+00> : vector<512x128xf32>
    %9 = tpu.matmul %6, %8, %cst {dimension_numbers = #tpu.dot_dimension_numbers<[1], [0], [0], [1], [0, 0, 1, 1], [], []>} : vector<512x256xbf16>, vector<256x128xbf16>, vector<512x128xf32> -> vector<512x128xf32>
    %c1 = arith.constant 1 : index
    %c0_4 = arith.constant 0 : index
    %c0_5 = arith.constant 0 : index
    %10 = vector.load %arg2[%c1, %c0_4, %c0_5] : memref<3x256x128xbf16, #tpu.memory_space<vmem>>, vector<1x256x128xbf16>
    %11 = vector.shape_cast %10 : vector<1x256x128xbf16> to vector<256x128xbf16>
    %cst_6 = arith.constant dense<0.000000e+00> : vector<512x128xf32>
    %12 = tpu.matmul %6, %11, %cst_6 {dimension_numbers = #tpu.dot_dimension_numbers<[1], [0], [0], [1], [0, 0, 1, 1], [], []>} : vector<512x256xbf16>, vector<256x128xbf16>, vector<512x128xf32> -> vector<512x128xf32>
    %13 = arith.addf %9, %12 : vector<512x128xf32>
    %c2 = arith.constant 2 : index
    %c0_7 = arith.constant 0 : index
    %c0_8 = arith.constant 0 : index
    %14 = vector.load %arg2[%c2, %c0_7, %c0_8] : memref<3x256x128xbf16, #tpu.memory_space<vmem>>, vector<1x256x128xbf16>
    %15 = vector.shape_cast %14 : vector<1x256x128xbf16> to vector<256x128xbf16>
    %cst_9 = arith.constant dense<0.000000e+00> : vector<512x128xf32>
    %16 = tpu.matmul %6, %15, %cst_9 {dimension_numbers = #tpu.dot_dimension_numbers<[1], [0], [0], [1], [0, 0, 1, 1], [], []>} : vector<512x256xbf16>, vector<256x128xbf16>, vector<512x128xf32> -> vector<512x128xf32>
    %17 = arith.addf %13, %16 : vector<512x128xf32>
    %c0_10 = arith.constant 0 : index
    %c0_11 = arith.constant 0 : index
    %18 = vector.load %arg3[%c0_10, %c0_11] : memref<512x128xf32, #tpu.memory_space<vmem>>, vector<512x128xf32>
    tpu.vector_store %arg3[%c0_10, %c0_11], %17 {strides = array<i32>} : memref<512x128xf32, #tpu.memory_space<vmem>>, vector<512x128xf32>,
    return
  }
  func.func @transform_0(%arg0: i32) -> (i32, i32) {
    %c0_i32 = arith.constant 0 : i32
    %c0_i32_0 = arith.constant 0 : i32
    return %arg0, %c0_i32 : i32, i32
  }
  func.func @transform_1(%arg0: i32) -> (i32, i32, i32) {
    %c0_i32 = arith.constant 0 : i32
    %c0_i32_0 = arith.constant 0 : i32
    %c0_i32_1 = arith.constant 0 : i32
    %c0_i32_2 = arith.constant 0 : i32
    return %c0_i32, %c0_i32_0, %c0_i32_1 : i32, i32, i32
  }
  func.func @transform_2(%arg0: i32) -> (i32, i32) {
    %c0_i32 = arith.constant 0 : i32
    %c0_i32_0 = arith.constant 0 : i32
    return %arg0, %c0_i32 : i32, i32
  }
}

</mosaic_0001>

<llo_original>
// kernel: pixel_embedding.1
$region0: #{pixel_embedding.1}
  #allocation0 [shape = 'u32[]', space=smem, size = 0x4, offset = 0x4, fixed_abs, tag = 'smem constant byte address 0x4 - core index']
  #allocation1 [shape = 'u32[144,128]{1,0:T(1,128)}', space=vmem, size = 0x12000, scoped, tag = 'internal scratch']
  %s0 = inlined_call_operand.vmem [shape: s32[512,1], index: 0, kind: input, shape index: {}]
  %s1 = inlined_call_operand.vmem [shape: bf16[3,256,128], index: 1, kind: input, shape index: {}]
  %s2 = inlined_call_operand.hbm [shape: f32[512,128], index: 2, kind: output, shape index: {}]
  %s3 = sld [smem:[#allocation0]]
  $region18: #{pixel_embedding.1} parent=0
    _
  %s5 = ssub.s32 1, %s3
  %s6 = scalar_select 0, %s5, %s3
  $region1: #{pixel_embedding.1} parent=0
    #allocation2 [shape = 'u8[262144]{0}', space=vmem, size = 0x40000, scoped, tag = 'output window, operand 0, single buffered']
    #allocation3 [shape = 's32[1]{0}', space=sflag, size = 0x4, scoped, tag = 'scoped memory for pixel_embedding.1']
    %7 = vsyncpa [#allocation3], 0
    // Predicated region
    $region2: #{pixel_embedding.1} parent=1 // pred_check
      _
    $region3: #{pixel_embedding.1} parent=1 // pred_check_branch
      %9 = sbr.rel (0) target = $region5
    $region4: #{pixel_embedding.1} parent=1 // pred_region
      _
    $region5: #{pixel_embedding.1} parent=1 // pred_fallthru
      _
    // Predicated region
    $region6: #{pixel_embedding.1} parent=1 // pred_check
      _
    $region7: #{pixel_embedding.1} parent=1 // pred_check_branch
      %11 = sbr.rel (0) target = $region9
    $region8: #{pixel_embedding.1} parent=1 // pred_region
      _
    $region9: #{pixel_embedding.1} parent=1 // pred_fallthru
      _
    %v13 = vld [vmem:[%s0] sm:$0xff]
    %v14 = vld [vmem:[%s0 + $0x8] sm:$0xff]
    %v15 = vld [vmem:[%s0 + $0x10] sm:$0xff]
    %v16 = vld [vmem:[%s0 + $0x18] sm:$0xff]
    %v17 = vld [vmem:[%s0 + $0x20] sm:$0xff]
    %v18 = vld [vmem:[%s0 + $0x28] sm:$0xff]
    %v19 = vld [vmem:[%s0 + $0x30] sm:$0xff]
    %v20 = vld [vmem:[%s0 + $0x38] sm:$0xff]
    %v21 = vld [vmem:[%s0 + $0x40] sm:$0xff]
    %v22 = vld [vmem:[%s0 + $0x48] sm:$0xff]
    %v23 = vld [vmem:[%s0 + $0x50] sm:$0xff]
    %v24 = vld [vmem:[%s0 + $0x58] sm:$0xff]
    %v25 = vld [vmem:[%s0 + $0x60] sm:$0xff]
    %v26 = vld [vmem:[%s0 + $0x68] sm:$0xff]
    %v27 = vld [vmem:[%s0 + $0x70] sm:$0xff]
    %v28 = vld [vmem:[%s0 + $0x78] sm:$0xff]
    %v29 = vld [vmem:[%s0 + $0x80] sm:$0xff]
    %v30 = vld [vmem:[%s0 + $0x88] sm:$0xff]
    %v31 = vld [vmem:[%s0 + $0x90] sm:$0xff]
    %v32 = vld [vmem:[%s0 + $0x98] sm:$0xff]
    %v33 = vld [vmem:[%s0 + $0xa0] sm:$0xff]
    %v34 = vld [vmem:[%s0 + $0xa8] sm:$0xff]
    %v35 = vld [vmem:[%s0 + $0xb0] sm:$0xff]
    %v36 = vld [vmem:[%s0 + $0xb8] sm:$0xff]
    %v37 = vld [vmem:[%s0 + $0xc0] sm:$0xff]
    %v38 = vld [vmem:[%s0 + $0xc8] sm:$0xff]
    %v39 = vld [vmem:[%s0 + $0xd0] sm:$0xff]
    %v40 = vld [vmem:[%s0 + $0xd8] sm:$0xff]
    %v41 = vld [vmem:[%s0 + $0xe0] sm:$0xff]
    %v42 = vld [vmem:[%s0 + $0xe8] sm:$0xff]
    %v43 = vld [vmem:[%s0 + $0xf0] sm:$0xff]
    %v44 = vld [vmem:[%s0 + $0xf8] sm:$0xff]
    %v45 = vld [vmem:[%s0 + $0x100] sm:$0xff]
    %v46 = vld [vmem:[%s0 + $0x108] sm:$0xff]
    %v47 = vld [vmem:[%s0 + $0x110] sm:$0xff]
    %v48 = vld [vmem:[%s0 + $0x118] sm:$0xff]
    %v49 = vld [vmem:[%s0 + $0x120] sm:$0xff]
    %v50 = vld [vmem:[%s0 + $0x128] sm:$0xff]
    %v51 = vld [vmem:[%s0 + $0x130] sm:$0xff]
    %v52 = vld [vmem:[%s0 + $0x138] sm:$0xff]
    %v53 = vld [vmem:[%s0 + $0x140] sm:$0xff]
    %v54 = vld [vmem:[%s0 + $0x148] sm:$0xff]
    %v55 = vld [vmem:[%s0 + $0x150] sm:$0xff]
    %v56 = vld [vmem:[%s0 + $0x158] sm:$0xff]
    %v57 = vld [vmem:[%s0 + $0x160] sm:$0xff]
    %v58 = vld [vmem:[%s0 + $0x168] sm:$0xff]
    %v59 = vld [vmem:[%s0 + $0x170] sm:$0xff]
    %v60 = vld [vmem:[%s0 + $0x178] sm:$0xff]
    %v61 = vld [vmem:[%s0 + $0x180] sm:$0xff]
    %v62 = vld [vmem:[%s0 + $0x188] sm:$0xff]
    %v63 = vld [vmem:[%s0 + $0x190] sm:$0xff]
    %v64 = vld [vmem:[%s0 + $0x198] sm:$0xff]
    %v65 = vld [vmem:[%s0 + $0x1a0] sm:$0xff]
    %v66 = vld [vmem:[%s0 + $0x1a8] sm:$0xff]
    %v67 = vld [vmem:[%s0 + $0x1b0] sm:$0xff]
    %v68 = vld [vmem:[%s0 + $0x1b8] sm:$0xff]
    %v69 = vld [vmem:[%s0 + $0x1c0] sm:$0xff]
    %v70 = vld [vmem:[%s0 + $0x1c8] sm:$0xff]
    %v71 = vld [vmem:[%s0 + $0x1d0] sm:$0xff]
    %v72 = vld [vmem:[%s0 + $0x1d8] sm:$0xff]
    %v73 = vld [vmem:[%s0 + $0x1e0] sm:$0xff]
    %v74 = vld [vmem:[%s0 + $0x1e8] sm:$0xff]
    %v75 = vld [vmem:[%s0 + $0x1f0] sm:$0xff]
    %v76 = vld [vmem:[%s0 + $0x1f8] sm:$0xff]
    %v77 = vlaneseq
    %v78 = vand.u32 %v77, 127
    %v79 = vadd.s32 %v78, 128
    %80 = vset.pattern.permute.xlu0 0
    %81 = vperm.xlu0 %80, %v13
    %v82 = vpop.permute.xlu0 %81
    %83 = vset.pattern.permute.xlu0 0
    %84 = vperm.xlu0 %83, %v14
    %v85 = vpop.permute.xlu0 %84
    %86 = vset.pattern.permute.xlu0 0
    %87 = vperm.xlu0 %86, %v15
    %v88 = vpop.permute.xlu0 %87
    %89 = vset.pattern.permute.xlu0 0
    %90 = vperm.xlu0 %89, %v16
    %v91 = vpop.permute.xlu0 %90
    %92 = vset.pattern.permute.xlu0 0
    %93 = vperm.xlu0 %92, %v17
    %v94 = vpop.permute.xlu0 %93
    %95 = vset.pattern.permute.xlu0 0
    %96 = vperm.xlu0 %95, %v18
    %v97 = vpop.permute.xlu0 %96
    %98 = vset.pattern.permute.xlu0 0
    %99 = vperm.xlu0 %98, %v19
    %v100 = vpop.permute.xlu0 %99
    %101 = vset.pattern.permute.xlu0 0
    %102 = vperm.xlu0 %101, %v20
    %v103 = vpop.permute.xlu0 %102
    %104 = vset.pattern.permute.xlu0 0
    %105 = vperm.xlu0 %104, %v21
    %v106 = vpop.permute.xlu0 %105
    %107 = vset.pattern.permute.xlu0 0
    %108 = vperm.xlu0 %107, %v22
    %v109 = vpop.permute.xlu0 %108
    %110 = vset.pattern.permute.xlu0 0
    %111 = vperm.xlu0 %110, %v23
    %v112 = vpop.permute.xlu0 %111
    %113 = vset.pattern.permute.xlu0 0
    %114 = vperm.xlu0 %113, %v24
    %v115 = vpop.permute.xlu0 %114
    %116 = vset.pattern.permute.xlu0 0
    %117 = vperm.xlu0 %116, %v25
    %v118 = vpop.permute.xlu0 %117
    %119 = vset.pattern.permute.xlu0 0
    %120 = vperm.xlu0 %119, %v26
    %v121 = vpop.permute.xlu0 %120
    %122 = vset.pattern.permute.xlu0 0
    %123 = vperm.xlu0 %122, %v27
    %v124 = vpop.permute.xlu0 %123
    %125 = vset.pattern.permute.xlu0 0
    %126 = vperm.xlu0 %125, %v28
    %v127 = vpop.permute.xlu0 %126
    %128 = vset.pattern.permute.xlu0 0
    %129 = vperm.xlu0 %128, %v29
    %v130 = vpop.permute.xlu0 %129
    %131 = vset.pattern.permute.xlu0 0
    %132 = vperm.xlu0 %131, %v30
    %v133 = vpop.permute.xlu0 %132
    %134 = vset.pattern.permute.xlu0 0
    %135 = vperm.xlu0 %134, %v31
    %v136 = vpop.permute.xlu0 %135
    %137 = vset.pattern.permute.xlu0 0
    %138 = vperm.xlu0 %137, %v32
    %v139 = vpop.permute.xlu0 %138
    %140 = vset.pattern.permute.xlu0 0
    %141 = vperm.xlu0 %140, %v33
    %v142 = vpop.permute.xlu0 %141
    %143 = vset.pattern.permute.xlu0 0
    %144 = vperm.xlu0 %143, %v34
    %v145 = vpop.permute.xlu0 %144
    %146 = vset.pattern.permute.xlu0 0
    %147 = vperm.xlu0 %146, %v35
    %v148 = vpop.permute.xlu0 %147
    %149 = vset.pattern.permute.xlu0 0
    %150 = vperm.xlu0 %149, %v36
    %v151 = vpop.permute.xlu0 %150
    %152 = vset.pattern.permute.xlu0 0
    %153 = vperm.xlu0 %152, %v37
    %v154 = vpop.permute.xlu0 %153
    %155 = vset.pattern.permute.xlu0 0
    %156 = vperm.xlu0 %155, %v38
    %v157 = vpop.permute.xlu0 %156
    %158 = vset.pattern.permute.xlu0 0
    %159 = vperm.xlu0 %158, %v39
    %v160 = vpop.permute.xlu0 %159
    %161 = vset.pattern.permute.xlu0 0
    %162 = vperm.xlu0 %161, %v40
    %v163 = vpop.permute.xlu0 %162
    %164 = vset.pattern.permute.xlu0 0
    %165 = vperm.xlu0 %164, %v41
    %v166 = vpop.permute.xlu0 %165
    %167 = vset.pattern.permute.xlu0 0
    %168 = vperm.xlu0 %167, %v42
    %v169 = vpop.permute.xlu0 %168
    %170 = vset.pattern.permute.xlu0 0
    %171 = vperm.xlu0 %170, %v43
    %v172 = vpop.permute.xlu0 %171
    %173 = vset.pattern.permute.xlu0 0
    %174 = vperm.xlu0 %173, %v44
    %v175 = vpop.permute.xlu0 %174
    %176 = vset.pattern.permute.xlu0 0
    %177 = vperm.xlu0 %176, %v45
    %v178 = vpop.permute.xlu0 %177
    %179 = vset.pattern.permute.xlu0 0
    %180 = vperm.xlu0 %179, %v46
    %v181 = vpop.permute.xlu0 %180
    %182 = vset.pattern.permute.xlu0 0
    %183 = vperm.xlu0 %182, %v47
    %v184 = vpop.permute.xlu0 %183
    %185 = vset.pattern.permute.xlu0 0
    %186 = vperm.xlu0 %185, %v48
    %v187 = vpop.permute.xlu0 %186
    %188 = vset.pattern.permute.xlu0 0
    %189 = vperm.xlu0 %188, %v49
    %v190 = vpop.permute.xlu0 %189
    %191 = vset.pattern.permute.xlu0 0
    %192 = vperm.xlu0 %191, %v50
    %v193 = vpop.permute.xlu0 %192
    %194 = vset.pattern.permute.xlu0 0
    %195 = vperm.xlu0 %194, %v51
    %v196 = vpop.permute.xlu0 %195
    %197 = vset.pattern.permute.xlu0 0
    %198 = vperm.xlu0 %197, %v52
    %v199 = vpop.permute.xlu0 %198
    %200 = vset.pattern.permute.xlu0 0
    %201 = vperm.xlu0 %200, %v53
    %v202 = vpop.permute.xlu0 %201
    %203 = vset.pattern.permute.xlu0 0
    %204 = vperm.xlu0 %203, %v54
    %v205 = vpop.permute.xlu0 %204
    %206 = vset.pattern.permute.xlu0 0
    %207 = vperm.xlu0 %206, %v55
    %v208 = vpop.permute.xlu0 %207
    %209 = vset.pattern.permute.xlu0 0
    %210 = vperm.xlu0 %209, %v56
    %v211 = vpop.permute.xlu0 %210
    %212 = vset.pattern.permute.xlu0 0
    %213 = vperm.xlu0 %212, %v57
    %v214 = vpop.permute.xlu0 %213
    %215 = vset.pattern.permute.xlu0 0
    %216 = vperm.xlu0 %215, %v58
    %v217 = vpop.permute.xlu0 %216
    %218 = vset.pattern.permute.xlu0 0
    %219 = vperm.xlu0 %218, %v59
    %v220 = vpop.permute.xlu0 %219
    %221 = vset.pattern.permute.xlu0 0
    %222 = vperm.xlu0 %221, %v60
    %v223 = vpop.permute.xlu0 %222
    %224 = vset.pattern.permute.xlu0 0
    %225 = vperm.xlu0 %224, %v61
    %v226 = vpop.permute.xlu0 %225
    %227 = vset.pattern.permute.xlu0 0
    %228 = vperm.xlu0 %227, %v62
    %v229 = vpop.permute.xlu0 %228
    %230 = vset.pattern.permute.xlu0 0
    %231 = vperm.xlu0 %230, %v63
    %v232 = vpop.permute.xlu0 %231
    %233 = vset.pattern.permute.xlu0 0
    %234 = vperm.xlu0 %233, %v64
    %v235 = vpop.permute.xlu0 %234
    %236 = vset.pattern.permute.xlu0 0
    %237 = vperm.xlu0 %236, %v65
    %v238 = vpop.permute.xlu0 %237
    %239 = vset.pattern.permute.xlu0 0
    %240 = vperm.xlu0 %239, %v66
    %v241 = vpop.permute.xlu0 %240
    %242 = vset.pattern.permute.xlu0 0
    %243 = vperm.xlu0 %242, %v67
    %v244 = vpop.permute.xlu0 %243
    %245 = vset.pattern.permute.xlu0 0
    %246 = vperm.xlu0 %245, %v68
    %v247 = vpop.permute.xlu0 %246
    %248 = vset.pattern.permute.xlu0 0
    %249 = vperm.xlu0 %248, %v69
    %v250 = vpop.permute.xlu0 %249
    %251 = vset.pattern.permute.xlu0 0
    %252 = vperm.xlu0 %251, %v70
    %v253 = vpop.permute.xlu0 %252
    %254 = vset.pattern.permute.xlu0 0
    %255 = vperm.xlu0 %254, %v71
    %v256 = vpop.permute.xlu0 %255
    %257 = vset.pattern.permute.xlu0 0
    %258 = vperm.xlu0 %257, %v72
    %v259 = vpop.permute.xlu0 %258
    %260 = vset.pattern.permute.xlu0 0
    %261 = vperm.xlu0 %260, %v73
    %v262 = vpop.permute.xlu0 %261
    %263 = vset.pattern.permute.xlu0 0
    %264 = vperm.xlu0 %263, %v74
    %v265 = vpop.permute.xlu0 %264
    %266 = vset.pattern.permute.xlu0 0
    %267 = vperm.xlu0 %266, %v75
    %v268 = vpop.permute.xlu0 %267
    %269 = vset.pattern.permute.xlu0 0
    %270 = vperm.xlu0 %269, %v76
    %v271 = vpop.permute.xlu0 %270
    %vm272 = vcmp.eq.s32.totalorder %v82, %v78
    %vm273 = vcmp.eq.s32.totalorder %v82, %v79
    %vm274 = vcmp.eq.s32.totalorder %v85, %v78
    %vm275 = vcmp.eq.s32.totalorder %v85, %v79
    %vm276 = vcmp.eq.s32.totalorder %v88, %v78
    %vm277 = vcmp.eq.s32.totalorder %v88, %v79
    %vm278 = vcmp.eq.s32.totalorder %v91, %v78
    %vm279 = vcmp.eq.s32.totalorder %v91, %v79
    %vm280 = vcmp.eq.s32.totalorder %v94, %v78
    %vm281 = vcmp.eq.s32.totalorder %v94, %v79
    %vm282 = vcmp.eq.s32.totalorder %v97, %v78
    %vm283 = vcmp.eq.s32.totalorder %v97, %v79
    %vm284 = vcmp.eq.s32.totalorder %v100, %v78
    %vm285 = vcmp.eq.s32.totalorder %v100, %v79
    %vm286 = vcmp.eq.s32.totalorder %v103, %v78
    %vm287 = vcmp.eq.s32.totalorder %v103, %v79
    %vm288 = vcmp.eq.s32.totalorder %v106, %v78
    %vm289 = vcmp.eq.s32.totalorder %v106, %v79
    %vm290 = vcmp.eq.s32.totalorder %v109, %v78
    %vm291 = vcmp.eq.s32.totalorder %v109, %v79
    %vm292 = vcmp.eq.s32.totalorder %v112, %v78
    %vm293 = vcmp.eq.s32.totalorder %v112, %v79
    %vm294 = vcmp.eq.s32.totalorder %v115, %v78
    %vm295 = vcmp.eq.s32.totalorder %v115, %v79
    %vm296 = vcmp.eq.s32.totalorder %v118, %v78
    %vm297 = vcmp.eq.s32.totalorder %v118, %v79
    %vm298 = vcmp.eq.s32.totalorder %v121, %v78
    %vm299 = vcmp.eq.s32.totalorder %v121, %v79
    %vm300 = vcmp.eq.s32.totalorder %v124, %v78
    %vm301 = vcmp.eq.s32.totalorder %v124, %v79
    %vm302 = vcmp.eq.s32.totalorder %v127, %v78
    %vm303 = vcmp.eq.s32.totalorder %v127, %v79
    %vm304 = vcmp.eq.s32.totalorder %v130, %v78
    %vm305 = vcmp.eq.s32.totalorder %v130, %v79
    %vm306 = vcmp.eq.s32.totalorder %v133, %v78
    %vm307 = vcmp.eq.s32.totalorder %v133, %v79
    %vm308 = vcmp.eq.s32.totalorder %v136, %v78
    %vm309 = vcmp.eq.s32.totalorder %v136, %v79
    %vm310 = vcmp.eq.s32.totalorder %v139, %v78
    %vm311 = vcmp.eq.s32.totalorder %v139, %v79
    %vm312 = vcmp.eq.s32.totalorder %v142, %v78
    %vm313 = vcmp.eq.s32.totalorder %v142, %v79
    %vm314 = vcmp.eq.s32.totalorder %v145, %v78
    %vm315 = vcmp.eq.s32.totalorder %v145, %v79
    %vm316 = vcmp.eq.s32.totalorder %v148, %v78
    %vm317 = vcmp.eq.s32.totalorder %v148, %v79
    %vm318 = vcmp.eq.s32.totalorder %v151, %v78
    %vm319 = vcmp.eq.s32.totalorder %v151, %v79
    %vm320 = vcmp.eq.s32.totalorder %v154, %v78
    %vm321 = vcmp.eq.s32.totalorder %v154, %v79
    %vm322 = vcmp.eq.s32.totalorder %v157, %v78
    %vm323 = vcmp.eq.s32.totalorder %v157, %v79
    %vm324 = vcmp.eq.s32.totalorder %v160, %v78
    %vm325 = vcmp.eq.s32.totalorder %v160, %v79
    %vm326 = vcmp.eq.s32.totalorder %v163, %v78
    %vm327 = vcmp.eq.s32.totalorder %v163, %v79
    %vm328 = vcmp.eq.s32.totalorder %v166, %v78
    %vm329 = vcmp.eq.s32.totalorder %v166, %v79
    %vm330 = vcmp.eq.s32.totalorder %v169, %v78
    %vm331 = vcmp.eq.s32.totalorder %v169, %v79
    %vm332 = vcmp.eq.s32.totalorder %v172, %v78
    %vm333 = vcmp.eq.s32.totalorder %v172, %v79
    %vm334 = vcmp.eq.s32.totalorder %v175, %v78
    %vm335 = vcmp.eq.s32.totalorder %v175, %v79
    %vm336 = vcmp.eq.s32.totalorder %v178, %v78
    %vm337 = vcmp.eq.s32.totalorder %v178, %v79
    %vm338 = vcmp.eq.s32.totalorder %v181, %v78
    %vm339 = vcmp.eq.s32.totalorder %v181, %v79
    %vm340 = vcmp.eq.s32.totalorder %v184, %v78
    %vm341 = vcmp.eq.s32.totalorder %v184, %v79
    %vm342 = vcmp.eq.s32.totalorder %v187, %v78
    %vm343 = vcmp.eq.s32.totalorder %v187, %v79
    %vm344 = vcmp.eq.s32.totalorder %v190, %v78
    %vm345 = vcmp.eq.s32.totalorder %v190, %v79
    %vm346 = vcmp.eq.s32.totalorder %v193, %v78
    %vm347 = vcmp.eq.s32.totalorder %v193, %v79
    %vm348 = vcmp.eq.s32.totalorder %v196, %v78
    %vm349 = vcmp.eq.s32.totalorder %v196, %v79
    %vm350 = vcmp.eq.s32.totalorder %v199, %v78
    %vm351 = vcmp.eq.s32.totalorder %v199, %v79
    %vm352 = vcmp.eq.s32.totalorder %v202, %v78
    %vm353 = vcmp.eq.s32.totalorder %v202, %v79
    %vm354 = vcmp.eq.s32.totalorder %v205, %v78
    %vm355 = vcmp.eq.s32.totalorder %v205, %v79
    %vm356 = vcmp.eq.s32.totalorder %v208, %v78
    %vm357 = vcmp.eq.s32.totalorder %v208, %v79
    %vm358 = vcmp.eq.s32.totalorder %v211, %v78
    %vm359 = vcmp.eq.s32.totalorder %v211, %v79
    %vm360 = vcmp.eq.s32.totalorder %v214, %v78
    %vm361 = vcmp.eq.s32.totalorder %v214, %v79
    %vm362 = vcmp.eq.s32.totalorder %v217, %v78
    %vm363 = vcmp.eq.s32.totalorder %v217, %v79
    %vm364 = vcmp.eq.s32.totalorder %v220, %v78
    %vm365 = vcmp.eq.s32.totalorder %v220, %v79
    %vm366 = vcmp.eq.s32.totalorder %v223, %v78
    %vm367 = vcmp.eq.s32.totalorder %v223, %v79
    %vm368 = vcmp.eq.s32.totalorder %v226, %v78
    %vm369 = vcmp.eq.s32.totalorder %v226, %v79
    %vm370 = vcmp.eq.s32.totalorder %v229, %v78
    %vm371 = vcmp.eq.s32.totalorder %v229, %v79
    %vm372 = vcmp.eq.s32.totalorder %v232, %v78
    %vm373 = vcmp.eq.s32.totalorder %v232, %v79
    %vm374 = vcmp.eq.s32.totalorder %v235, %v78
    %vm375 = vcmp.eq.s32.totalorder %v235, %v79
    %vm376 = vcmp.eq.s32.totalorder %v238, %v78
    %vm377 = vcmp.eq.s32.totalorder %v238, %v79
    %vm378 = vcmp.eq.s32.totalorder %v241, %v78
    %vm379 = vcmp.eq.s32.totalorder %v241, %v79
    %vm380 = vcmp.eq.s32.totalorder %v244, %v78
    %vm381 = vcmp.eq.s32.totalorder %v244, %v79
    %vm382 = vcmp.eq.s32.totalorder %v247, %v78
    %vm383 = vcmp.eq.s32.totalorder %v247, %v79
    %vm384 = vcmp.eq.s32.totalorder %v250, %v78
    %vm385 = vcmp.eq.s32.totalorder %v250, %v79
    %vm386 = vcmp.eq.s32.totalorder %v253, %v78
    %vm387 = vcmp.eq.s32.totalorder %v253, %v79
    %vm388 = vcmp.eq.s32.totalorder %v256, %v78
    %vm389 = vcmp.eq.s32.totalorder %v256, %v79
    %vm390 = vcmp.eq.s32.totalorder %v259, %v78
    %vm391 = vcmp.eq.s32.totalorder %v259, %v79
    %vm392 = vcmp.eq.s32.totalorder %v262, %v78
    %vm393 = vcmp.eq.s32.totalorder %v262, %v79
    %vm394 = vcmp.eq.s32.totalorder %v265, %v78
    %vm395 = vcmp.eq.s32.totalorder %v265, %v79
    %vm396 = vcmp.eq.s32.totalorder %v268, %v78
    %vm397 = vcmp.eq.s32.totalorder %v268, %v79
    %vm398 = vcmp.eq.s32.totalorder %v271, %v78
    %vm399 = vcmp.eq.s32.totalorder %v271, %v79
    %v400 = vsel %vm272, 1, 0
    %v401 = vsel %vm273, 1, 0
    %v402 = vsel %vm274, 1, 0
    %v403 = vsel %vm275, 1, 0
    %v404 = vsel %vm276, 1, 0
    %v405 = vsel %vm277, 1, 0
    %v406 = vsel %vm278, 1, 0
    %v407 = vsel %vm279, 1, 0
    %v408 = vsel %vm280, 1, 0
    %v409 = vsel %vm281, 1, 0
    %v410 = vsel %vm282, 1, 0
    %v411 = vsel %vm283, 1, 0
    %v412 = vsel %vm284, 1, 0
    %v413 = vsel %vm285, 1, 0
    %v414 = vsel %vm286, 1, 0
    %v415 = vsel %vm287, 1, 0
    %v416 = vsel %vm288, 1, 0
    %v417 = vsel %vm289, 1, 0
    %v418 = vsel %vm290, 1, 0
    %v419 = vsel %vm291, 1, 0
    %v420 = vsel %vm292, 1, 0
    %v421 = vsel %vm293, 1, 0
    %v422 = vsel %vm294, 1, 0
    %v423 = vsel %vm295, 1, 0
    %v424 = vsel %vm296, 1, 0
    %v425 = vsel %vm297, 1, 0
    %v426 = vsel %vm298, 1, 0
    %v427 = vsel %vm299, 1, 0
    %v428 = vsel %vm300, 1, 0
    %v429 = vsel %vm301, 1, 0
    %v430 = vsel %vm302, 1, 0
    %v431 = vsel %vm303, 1, 0
    %v432 = vsel %vm304, 1, 0
    %v433 = vsel %vm305, 1, 0
    %v434 = vsel %vm306, 1, 0
    %v435 = vsel %vm307, 1, 0
    %v436 = vsel %vm308, 1, 0
    %v437 = vsel %vm309, 1, 0
    %v438 = vsel %vm310, 1, 0
    %v439 = vsel %vm311, 1, 0
    %v440 = vsel %vm312, 1, 0
    %v441 = vsel %vm313, 1, 0
    %v442 = vsel %vm314, 1, 0
    %v443 = vsel %vm315, 1, 0
    %v444 = vsel %vm316, 1, 0
    %v445 = vsel %vm317, 1, 0
    %v446 = vsel %vm318, 1, 0
    %v447 = vsel %vm319, 1, 0
    %v448 = vsel %vm320, 1, 0
    %v449 = vsel %vm321, 1, 0
    %v450 = vsel %vm322, 1, 0
    %v451 = vsel %vm323, 1, 0
    %v452 = vsel %vm324, 1, 0
    %v453 = vsel %vm325, 1, 0
    %v454 = vsel %vm326, 1, 0
    %v455 = vsel %vm327, 1, 0
    %v456 = vsel %vm328, 1, 0
    %v457 = vsel %vm329, 1, 0
    %v458 = vsel %vm330, 1, 0
    %v459 = vsel %vm331, 1, 0
    %v460 = vsel %vm332, 1, 0
    %v461 = vsel %vm333, 1, 0
    %v462 = vsel %vm334, 1, 0
    %v463 = vsel %vm335, 1, 0
    %v464 = vsel %vm336, 1, 0
    %v465 = vsel %vm337, 1, 0
    %v466 = vsel %vm338, 1, 0
    %v467 = vsel %vm339, 1, 0
    %v468 = vsel %vm340, 1, 0
    %v469 = vsel %vm341, 1, 0
    %v470 = vsel %vm342, 1, 0
    %v471 = vsel %vm343, 1, 0
    %v472 = vsel %vm344, 1, 0
    %v473 = vsel %vm345, 1, 0
    %v474 = vsel %vm346, 1, 0
    %v475 = vsel %vm347, 1, 0
    %v476 = vsel %vm348, 1, 0
    %v477 = vsel %vm349, 1, 0
    %v478 = vsel %vm350, 1, 0
    %v479 = vsel %vm351, 1, 0
    %v480 = vsel %vm352, 1, 0
    %v481 = vsel %vm353, 1, 0
    %v482 = vsel %vm354, 1, 0
    %v483 = vsel %vm355, 1, 0
    %v484 = vsel %vm356, 1, 0
    %v485 = vsel %vm357, 1, 0
    %v486 = vsel %vm358, 1, 0
    %v487 = vsel %vm359, 1, 0
    %v488 = vsel %vm360, 1, 0
    %v489 = vsel %vm361, 1, 0
    %v490 = vsel %vm362, 1, 0
    %v491 = vsel %vm363, 1, 0
    %v492 = vsel %vm364, 1, 0
    %v493 = vsel %vm365, 1, 0
    %v494 = vsel %vm366, 1, 0
    %v495 = vsel %vm367, 1, 0
    %v496 = vsel %vm368, 1, 0
    %v497 = vsel %vm369, 1, 0
    %v498 = vsel %vm370, 1, 0
    %v499 = vsel %vm371, 1, 0
    %v500 = vsel %vm372, 1, 0
    %v501 = vsel %vm373, 1, 0
    %v502 = vsel %vm374, 1, 0
    %v503 = vsel %vm375, 1, 0
    %v504 = vsel %vm376, 1, 0
    %v505 = vsel %vm377, 1, 0
    %v506 = vsel %vm378, 1, 0
    %v507 = vsel %vm379, 1, 0
    %v508 = vsel %vm380, 1, 0
    %v509 = vsel %vm381, 1, 0
    %v510 = vsel %vm382, 1, 0
    %v511 = vsel %vm383, 1, 0
    %v512 = vsel %vm384, 1, 0
    %v513 = vsel %vm385, 1, 0
    %v514 = vsel %vm386, 1, 0
    %v515 = vsel %vm387, 1, 0
    %v516 = vsel %vm388, 1, 0
    %v517 = vsel %vm389, 1, 0
    %v518 = vsel %vm390, 1, 0
    %v519 = vsel %vm391, 1, 0
    %v520 = vsel %vm392, 1, 0
    %v521 = vsel %vm393, 1, 0
    %v522 = vsel %vm394, 1, 0
    %v523 = vsel %vm395, 1, 0
    %v524 = vsel %vm396, 1, 0
    %v525 = vsel %vm397, 1, 0
    %v526 = vsel %vm398, 1, 0
    %v527 = vsel %vm399, 1, 0
    %v528 = vcvt.s32.f32 %v400
    %v529 = vcvt.s32.f32 %v401
    %v530 = vcvt.s32.f32 %v402
    %v531 = vcvt.s32.f32 %v403
    %v532 = vcvt.s32.f32 %v404
    %v533 = vcvt.s32.f32 %v405
    %v534 = vcvt.s32.f32 %v406
    %v535 = vcvt.s32.f32 %v407
    %v536 = vcvt.s32.f32 %v408
    %v537 = vcvt.s32.f32 %v409
    %v538 = vcvt.s32.f32 %v410
    %v539 = vcvt.s32.f32 %v411
    %v540 = vcvt.s32.f32 %v412
    %v541 = vcvt.s32.f32 %v413
    %v542 = vcvt.s32.f32 %v414
    %v543 = vcvt.s32.f32 %v415
    %v544 = vcvt.s32.f32 %v416
    %v545 = vcvt.s32.f32 %v417
    %v546 = vcvt.s32.f32 %v418
    %v547 = vcvt.s32.f32 %v419
    %v548 = vcvt.s32.f32 %v420
    %v549 = vcvt.s32.f32 %v421
    %v550 = vcvt.s32.f32 %v422
    %v551 = vcvt.s32.f32 %v423
    %v552 = vcvt.s32.f32 %v424
    %v553 = vcvt.s32.f32 %v425
    %v554 = vcvt.s32.f32 %v426
    %v555 = vcvt.s32.f32 %v427
    %v556 = vcvt.s32.f32 %v428
    %v557 = vcvt.s32.f32 %v429
    %v558 = vcvt.s32.f32 %v430
    %v559 = vcvt.s32.f32 %v431
    %v560 = vcvt.s32.f32 %v432
    %v561 = vcvt.s32.f32 %v433
    %v562 = vcvt.s32.f32 %v434
    %v563 = vcvt.s32.f32 %v435
    %v564 = vcvt.s32.f32 %v436
    %v565 = vcvt.s32.f32 %v437
    %v566 = vcvt.s32.f32 %v438
    %v567 = vcvt.s32.f32 %v439
    %v568 = vcvt.s32.f32 %v440
    %v569 = vcvt.s32.f32 %v441
    %v570 = vcvt.s32.f32 %v442
    %v571 = vcvt.s32.f32 %v443
    %v572 = vcvt.s32.f32 %v444
    %v573 = vcvt.s32.f32 %v445
    %v574 = vcvt.s32.f32 %v446
    %v575 = vcvt.s32.f32 %v447
    %v576 = vcvt.s32.f32 %v448
    %v577 = vcvt.s32.f32 %v449
    %v578 = vcvt.s32.f32 %v450
    %v579 = vcvt.s32.f32 %v451
    %v580 = vcvt.s32.f32 %v452
    %v581 = vcvt.s32.f32 %v453
    %v582 = vcvt.s32.f32 %v454
    %v583 = vcvt.s32.f32 %v455
    %v584 = vcvt.s32.f32 %v456
    %v585 = vcvt.s32.f32 %v457
    %v586 = vcvt.s32.f32 %v458
    %v587 = vcvt.s32.f32 %v459
    %v588 = vcvt.s32.f32 %v460
    %v589 = vcvt.s32.f32 %v461
    %v590 = vcvt.s32.f32 %v462
    %v591 = vcvt.s32.f32 %v463
    %v592 = vcvt.s32.f32 %v464
    %v593 = vcvt.s32.f32 %v465
    %v594 = vcvt.s32.f32 %v466
    %v595 = vcvt.s32.f32 %v467
    %v596 = vcvt.s32.f32 %v468
    %v597 = vcvt.s32.f32 %v469
    %v598 = vcvt.s32.f32 %v470
    %v599 = vcvt.s32.f32 %v471
    %v600 = vcvt.s32.f32 %v472
    %v601 = vcvt.s32.f32 %v473
    %v602 = vcvt.s32.f32 %v474
    %v603 = vcvt.s32.f32 %v475
    %v604 = vcvt.s32.f32 %v476
    %v605 = vcvt.s32.f32 %v477
    %v606 = vcvt.s32.f32 %v478
    %v607 = vcvt.s32.f32 %v479
    %v608 = vcvt.s32.f32 %v480
    %v609 = vcvt.s32.f32 %v481
    %v610 = vcvt.s32.f32 %v482
    %v611 = vcvt.s32.f32 %v483
    %v612 = vcvt.s32.f32 %v484
    %v613 = vcvt.s32.f32 %v485
    %v614 = vcvt.s32.f32 %v486
    %v615 = vcvt.s32.f32 %v487
    %v616 = vcvt.s32.f32 %v488
    %v617 = vcvt.s32.f32 %v489
    %v618 = vcvt.s32.f32 %v490
    %v619 = vcvt.s32.f32 %v491
    %v620 = vcvt.s32.f32 %v492
    %v621 = vcvt.s32.f32 %v493
    %v622 = vcvt.s32.f32 %v494
    %v623 = vcvt.s32.f32 %v495
    %v624 = vcvt.s32.f32 %v496
    %v625 = vcvt.s32.f32 %v497
    %v626 = vcvt.s32.f32 %v498
    %v627 = vcvt.s32.f32 %v499
    %v628 = vcvt.s32.f32 %v500
    %v629 = vcvt.s32.f32 %v501
    %v630 = vcvt.s32.f32 %v502
    %v631 = vcvt.s32.f32 %v503
    %v632 = vcvt.s32.f32 %v504
    %v633 = vcvt.s32.f32 %v505
    %v634 = vcvt.s32.f32 %v506
    %v635 = vcvt.s32.f32 %v507
    %v636 = vcvt.s32.f32 %v508
    %v637 = vcvt.s32.f32 %v509
    %v638 = vcvt.s32.f32 %v510
    %v639 = vcvt.s32.f32 %v511
    %v640 = vcvt.s32.f32 %v512
    %v641 = vcvt.s32.f32 %v513
    %v642 = vcvt.s32.f32 %v514
    %v643 = vcvt.s32.f32 %v515
    %v644 = vcvt.s32.f32 %v516
    %v645 = vcvt.s32.f32 %v517
    %v646 = vcvt.s32.f32 %v518
    %v647 = vcvt.s32.f32 %v519
    %v648 = vcvt.s32.f32 %v520
    %v649 = vcvt.s32.f32 %v521
    %v650 = vcvt.s32.f32 %v522
    %v651 = vcvt.s32.f32 %v523
    %v652 = vcvt.s32.f32 %v524
    %v653 = vcvt.s32.f32 %v525
    %v654 = vcvt.s32.f32 %v526
    %v655 = vcvt.s32.f32 %v527
    %v656 = vpack.c.bf16 %v530, %v528
    %v657 = vpack.c.bf16 %v531, %v529
    %v658 = vpack.c.bf16 %v534, %v532
    %v659 = vpack.c.bf16 %v535, %v533
    %v660 = vpack.c.bf16 %v538, %v536
    %v661 = vpack.c.bf16 %v539, %v537
    %v662 = vpack.c.bf16 %v542, %v540
    %v663 = vpack.c.bf16 %v543, %v541
    %v664 = vpack.c.bf16 %v546, %v544
    %v665 = vpack.c.bf16 %v547, %v545
    %v666 = vpack.c.bf16 %v550, %v548
    %v667 = vpack.c.bf16 %v551, %v549
    %v668 = vpack.c.bf16 %v554, %v552
    %v669 = vpack.c.bf16 %v555, %v553
    %v670 = vpack.c.bf16 %v558, %v556
    %v671 = vpack.c.bf16 %v559, %v557
    %v672 = vpack.c.bf16 %v562, %v560
    %v673 = vpack.c.bf16 %v563, %v561
    %v674 = vpack.c.bf16 %v566, %v564
    %v675 = vpack.c.bf16 %v567, %v565
    %v676 = vpack.c.bf16 %v570, %v568
    %v677 = vpack.c.bf16 %v571, %v569
    %v678 = vpack.c.bf16 %v574, %v572
    %v679 = vpack.c.bf16 %v575, %v573
    %v680 = vpack.c.bf16 %v578, %v576
    %v681 = vpack.c.bf16 %v579, %v577
    %v682 = vpack.c.bf16 %v582, %v580
    %v683 = vpack.c.bf16 %v583, %v581
    %v684 = vpack.c.bf16 %v586, %v584
    %v685 = vpack.c.bf16 %v587, %v585
    %v686 = vpack.c.bf16 %v590, %v588
    %v687 = vpack.c.bf16 %v591, %v589
    %v688 = vpack.c.bf16 %v594, %v592
    %v689 = vpack.c.bf16 %v595, %v593
    %v690 = vpack.c.bf16 %v598, %v596
    %v691 = vpack.c.bf16 %v599, %v597
    %v692 = vpack.c.bf16 %v602, %v600
    %v693 = vpack.c.bf16 %v603, %v601
    %v694 = vpack.c.bf16 %v606, %v604
    %v695 = vpack.c.bf16 %v607, %v605
    %v696 = vpack.c.bf16 %v610, %v608
    %v697 = vpack.c.bf16 %v611, %v609
    %v698 = vpack.c.bf16 %v614, %v612
    %v699 = vpack.c.bf16 %v615, %v613
    %v700 = vpack.c.bf16 %v618, %v616
    %v701 = vpack.c.bf16 %v619, %v617
    %v702 = vpack.c.bf16 %v622, %v620
    %v703 = vpack.c.bf16 %v623, %v621
    %v704 = vpack.c.bf16 %v626, %v624
    %v705 = vpack.c.bf16 %v627, %v625
    %v706 = vpack.c.bf16 %v630, %v628
    %v707 = vpack.c.bf16 %v631, %v629
    %v708 = vpack.c.bf16 %v634, %v632
    %v709 = vpack.c.bf16 %v635, %v633
    %v710 = vpack.c.bf16 %v638, %v636
    %v711 = vpack.c.bf16 %v639, %v637
    %v712 = vpack.c.bf16 %v642, %v640
    %v713 = vpack.c.bf16 %v643, %v641
    %v714 = vpack.c.bf16 %v646, %v644
    %v715 = vpack.c.bf16 %v647, %v645
    %v716 = vpack.c.bf16 %v650, %v648
    %v717 = vpack.c.bf16 %v651, %v649
    %v718 = vpack.c.bf16 %v654, %v652
    %v719 = vpack.c.bf16 %v655, %v653
    %v720 = vld [vmem:[%s1] sm:$0xf]
    %v721 = vld [vmem:[%s1 + $0x4] sm:$0xf]
    %v722 = vld [vmem:[%s1 + $0x8] sm:$0xf]
    %v723 = vld [vmem:[%s1 + $0xc] sm:$0xf]
    %v724 = vld [vmem:[%s1 + $0x10] sm:$0xf]
    %v725 = vld [vmem:[%s1 + $0x14] sm:$0xf]
    %v726 = vld [vmem:[%s1 + $0x18] sm:$0xf]
    %v727 = vld [vmem:[%s1 + $0x1c] sm:$0xf]
    %v728 = vld [vmem:[%s1 + $0x20] sm:$0xf]
    %v729 = vld [vmem:[%s1 + $0x24] sm:$0xf]
    %v730 = vld [vmem:[%s1 + $0x28] sm:$0xf]
    %v731 = vld [vmem:[%s1 + $0x2c] sm:$0xf]
    %v732 = vld [vmem:[%s1 + $0x30] sm:$0xf]
    %v733 = vld [vmem:[%s1 + $0x34] sm:$0xf]
    %v734 = vld [vmem:[%s1 + $0x38] sm:$0xf]
    %v735 = vld [vmem:[%s1 + $0x3c] sm:$0xf]
    %v736 = vld [vmem:[%s1 + $0x40] sm:$0xf]
    %v737 = vld [vmem:[%s1 + $0x44] sm:$0xf]
    %v738 = vld [vmem:[%s1 + $0x48] sm:$0xf]
    %v739 = vld [vmem:[%s1 + $0x4c] sm:$0xf]
    %v740 = vld [vmem:[%s1 + $0x50] sm:$0xf]
    %v741 = vld [vmem:[%s1 + $0x54] sm:$0xf]
    %v742 = vld [vmem:[%s1 + $0x58] sm:$0xf]
    %v743 = vld [vmem:[%s1 + $0x5c] sm:$0xf]
    %v744 = vld [vmem:[%s1 + $0x60] sm:$0xf]
    %v745 = vld [vmem:[%s1 + $0x64] sm:$0xf]
    %v746 = vld [vmem:[%s1 + $0x68] sm:$0xf]
    %v747 = vld [vmem:[%s1 + $0x6c] sm:$0xf]
    %v748 = vld [vmem:[%s1 + $0x70] sm:$0xf]
    %v749 = vld [vmem:[%s1 + $0x74] sm:$0xf]
    %v750 = vld [vmem:[%s1 + $0x78] sm:$0xf]
    %v751 = vld [vmem:[%s1 + $0x7c] sm:$0xf]
    %s752 = scalar_lea.vmem %s1, 128
    %v753 = vld [vmem:[%s752] sm:$0xf]
    %v754 = vld [vmem:[%s752 + $0x4] sm:$0xf]
    %v755 = vld [vmem:[%s752 + $0x8] sm:$0xf]
    %v756 = vld [vmem:[%s752 + $0xc] sm:$0xf]
    %v757 = vld [vmem:[%s752 + $0x10] sm:$0xf]
    %v758 = vld [vmem:[%s752 + $0x14] sm:$0xf]
    %v759 = vld [vmem:[%s752 + $0x18] sm:$0xf]
    %v760 = vld [vmem:[%s752 + $0x1c] sm:$0xf]
    %v761 = vld [vmem:[%s752 + $0x20] sm:$0xf]
    %v762 = vld [vmem:[%s752 + $0x24] sm:$0xf]
    %v763 = vld [vmem:[%s752 + $0x28] sm:$0xf]
    %v764 = vld [vmem:[%s752 + $0x2c] sm:$0xf]
    %v765 = vld [vmem:[%s752 + $0x30] sm:$0xf]
    %v766 = vld [vmem:[%s752 + $0x34] sm:$0xf]
    %v767 = vld [vmem:[%s752 + $0x38] sm:$0xf]
    %v768 = vld [vmem:[%s752 + $0x3c] sm:$0xf]
    %v769 = vld [vmem:[%s752 + $0x40] sm:$0xf]
    %v770 = vld [vmem:[%s752 + $0x44] sm:$0xf]
    %v771 = vld [vmem:[%s752 + $0x48] sm:$0xf]
    %v772 = vld [vmem:[%s752 + $0x4c] sm:$0xf]
    %v773 = vld [vmem:[%s752 + $0x50] sm:$0xf]
    %v774 = vld [vmem:[%s752 + $0x54] sm:$0xf]
    %v775 = vld [vmem:[%s752 + $0x58] sm:$0xf]
    %v776 = vld [vmem:[%s752 + $0x5c] sm:$0xf]
    %v777 = vld [vmem:[%s752 + $0x60] sm:$0xf]
    %v778 = vld [vmem:[%s752 + $0x64] sm:$0xf]
    %v779 = vld [vmem:[%s752 + $0x68] sm:$0xf]
    %v780 = vld [vmem:[%s752 + $0x6c] sm:$0xf]
    %v781 = vld [vmem:[%s752 + $0x70] sm:$0xf]
    %v782 = vld [vmem:[%s752 + $0x74] sm:$0xf]
    %v783 = vld [vmem:[%s752 + $0x78] sm:$0xf]
    %v784 = vld [vmem:[%s752 + $0x7c] sm:$0xf]
    %v817 = vunpack.c.l.b16 %v753
    %v818 = vunpack.c.l.b16 %v754
    %v819 = vunpack.c.l.b16 %v755
    %v820 = vunpack.c.l.b16 %v756
    %v821 = vunpack.c.l.b16 %v757
    %v822 = vunpack.c.l.b16 %v758
    %v823 = vunpack.c.l.b16 %v759
    %v824 = vunpack.c.l.b16 %v760
    %v825 = vunpack.c.l.b16 %v761
    %v826 = vunpack.c.l.b16 %v762
    %v827 = vunpack.c.l.b16 %v763
    %v828 = vunpack.c.l.b16 %v764
    %v829 = vunpack.c.l.b16 %v765
    %v830 = vunpack.c.l.b16 %v766
    %v831 = vunpack.c.l.b16 %v767
    %v832 = vunpack.c.l.b16 %v768
    %v833 = vunpack.c.l.b16 %v769
    %v834 = vunpack.c.l.b16 %v770
    %v835 = vunpack.c.l.b16 %v771
    %v836 = vunpack.c.l.b16 %v772
    %v837 = vunpack.c.l.b16 %v773
    %v838 = vunpack.c.l.b16 %v774
    %v839 = vunpack.c.l.b16 %v775
    %v840 = vunpack.c.l.b16 %v776
    %v841 = vunpack.c.l.b16 %v777
    %v842 = vunpack.c.l.b16 %v778
    %v843 = vunpack.c.l.b16 %v779
    %v844 = vunpack.c.l.b16 %v780
    %v845 = vunpack.c.l.b16 %v781
    %v846 = vunpack.c.l.b16 %v782
    %v847 = vunpack.c.l.b16 %v783
    %v848 = vunpack.c.l.b16 %v784
    %v849 = vpack.c.b16 %v818, %v817
    %v850 = vpack.c.b16 %v820, %v819
    %v851 = vpack.c.b16 %v822, %v821
    %v852 = vpack.c.b16 %v824, %v823
    %v853 = vpack.c.b16 %v826, %v825
    %v854 = vpack.c.b16 %v828, %v827
    %v855 = vpack.c.b16 %v830, %v829
    %v856 = vpack.c.b16 %v832, %v831
    %v857 = vpack.c.b16 %v834, %v833
    %v858 = vpack.c.b16 %v836, %v835
    %v859 = vpack.c.b16 %v838, %v837
    %v860 = vpack.c.b16 %v840, %v839
    %v861 = vpack.c.b16 %v842, %v841
    %v862 = vpack.c.b16 %v844, %v843
    %v863 = vpack.c.b16 %v846, %v845
    %v864 = vpack.c.b16 %v848, %v847
    %881 = vmatprep.subr.bf16.mxu0 0
    %882 = vmatpush1.bf16.msra.mxu0 %v856
    %883 = vmatprep.subr.bf16.mxu0 0
    %884 = vmatpush1.bf16.msra.mxu0 %v855
    %885 = vmatprep.subr.bf16.mxu0 0
    %886 = vmatpush1.bf16.msra.mxu0 %v854
    %887 = vmatprep.subr.bf16.mxu0 0
    %888 = vmatpush1.bf16.msra.mxu0 %v853
    %889 = vmatprep.subr.bf16.mxu0 0
    %890 = vmatpush1.bf16.msra.mxu0 %v852
    %891 = vmatprep.subr.bf16.mxu0 0
    %892 = vmatpush1.bf16.msra.mxu0 %v851
    %893 = vmatprep.subr.bf16.mxu0 0
    %894 = vmatpush1.bf16.msra.mxu0 %v850
    %895 = vmatprep.subr.bf16.mxu0 0
    %896 = vmatpush1.bf16.msra.mxu0 %v849
    %897 = vmatprep.subr.bf16.mxu0 0
    %898 = vmatpush2.bf16.msra.mxu0 %v864
    %899 = vmatprep.subr.bf16.mxu0 0
    %900 = vmatpush2.bf16.msra.mxu0 %v863
    %901 = vmatprep.subr.bf16.mxu0 0
    %902 = vmatpush2.bf16.msra.mxu0 %v862
    %903 = vmatprep.subr.bf16.mxu0 0
    %904 = vmatpush2.bf16.msra.mxu0 %v861
    %905 = vmatprep.subr.bf16.mxu0 0
    %906 = vmatpush2.bf16.msra.mxu0 %v860
    %907 = vmatprep.subr.bf16.mxu0 0
    %908 = vmatpush2.bf16.msra.mxu0 %v859
    %909 = vmatprep.subr.bf16.mxu0 0
    %910 = vmatpush2.bf16.msra.mxu0 %v858
    %911 = vmatprep.subr.bf16.mxu0 0
    %912 = vmatpush2.bf16.msra.mxu0 %v857
    %913 = vmatprep.mubr.bf16.mxu0 %v657
    %914 = vmatmul.mubr.bf16.gmra.mxu0 %v656
    %v915 = vpop.f32.mrf.mxu0
    %v916 = vadd.f32 0.0, %v915
    %v917 = vpop.f32.mrf.mxu0
    %v918 = vpop.f32.mrf.mxu0
    %v919 = vadd.f32 0.0, %v918
    %v920 = vpop.f32.mrf.mxu0
    %921 = vmatprep.mubr.bf16.mxu0 %v659
    %922 = vmatmul.mubr.bf16.gmra.mxu0 %v658
    %v923 = vpop.f32.mrf.mxu0
    %v924 = vadd.f32 0.0, %v923
    %v925 = vpop.f32.mrf.mxu0
    %v926 = vpop.f32.mrf.mxu0
    %v927 = vadd.f32 0.0, %v926
    %v928 = vpop.f32.mrf.mxu0
    %929 = vmatprep.mubr.bf16.mxu0 %v661
    %930 = vmatmul.mubr.bf16.gmra.mxu0 %v660
    %v931 = vpop.f32.mrf.mxu0
    %v932 = vadd.f32 0.0, %v931
    %v933 = vpop.f32.mrf.mxu0
    %v934 = vpop.f32.mrf.mxu0
    %v935 = vadd.f32 0.0, %v934
    %v936 = vpop.f32.mrf.mxu0
    %937 = vmatprep.mubr.bf16.mxu0 %v663
    %938 = vmatmul.mubr.bf16.gmra.mxu0 %v662
    %v939 = vpop.f32.mrf.mxu0
    %v940 = vadd.f32 0.0, %v939
    %v941 = vpop.f32.mrf.mxu0
    %v942 = vpop.f32.mrf.mxu0
    %v943 = vadd.f32 0.0, %v942
    %v944 = vpop.f32.mrf.mxu0
    %945 = vmatprep.mubr.bf16.mxu0 %v665
    %946 = vmatmul.mubr.bf16.gmra.mxu0 %v664
    %v947 = vpop.f32.mrf.mxu0
    %v948 = vadd.f32 0.0, %v947
    %v949 = vpop.f32.mrf.mxu0
    %v950 = vpop.f32.mrf.mxu0
    %v951 = vadd.f32 0.0, %v950
    %v952 = vpop.f32.mrf.mxu0
    %953 = vmatprep.mubr.bf16.mxu0 %v667
    %954 = vmatmul.mubr.bf16.gmra.mxu0 %v666
    %v955 = vpop.f32.mrf.mxu0
    %v956 = vadd.f32 0.0, %v955
    %v957 = vpop.f32.mrf.mxu0
    %v958 = vpop.f32.mrf.mxu0
    %v959 = vadd.f32 0.0, %v958
    %v960 = vpop.f32.mrf.mxu0
    %961 = vmatprep.mubr.bf16.mxu0 %v669
    %962 = vmatmul.mubr.bf16.gmra.mxu0 %v668
    %v963 = vpop.f32.mrf.mxu0
    %v964 = vadd.f32 0.0, %v963
    %v965 = vpop.f32.mrf.mxu0
    %v966 = vpop.f32.mrf.mxu0
    %v967 = vadd.f32 0.0, %v966
    %v968 = vpop.f32.mrf.mxu0
    %969 = vmatprep.mubr.bf16.mxu0 %v671
    %970 = vmatmul.mubr.bf16.gmra.mxu0 %v670
    %v971 = vpop.f32.mrf.mxu0
    %v972 = vadd.f32 0.0, %v971
    %v973 = vpop.f32.mrf.mxu0
    %v974 = vpop.f32.mrf.mxu0
    %v975 = vadd.f32 0.0, %v974
    %v976 = vpop.f32.mrf.mxu0
    %977 = vmatprep.mubr.bf16.mxu0 %v673
    %978 = vmatmul.mubr.bf16.gmra.mxu0 %v672
    %v979 = vpop.f32.mrf.mxu0
    %v980 = vadd.f32 0.0, %v979
    %v981 = vpop.f32.mrf.mxu0
    %v982 = vpop.f32.mrf.mxu0
    %v983 = vadd.f32 0.0, %v982
    %v984 = vpop.f32.mrf.mxu0
    %985 = vmatprep.mubr.bf16.mxu0 %v675
    %986 = vmatmul.mubr.bf16.gmra.mxu0 %v674
    %v987 = vpop.f32.mrf.mxu0
    %v988 = vadd.f32 0.0, %v987
    %v989 = vpop.f32.mrf.mxu0
    %v990 = vpop.f32.mrf.mxu0
    %v991 = vadd.f32 0.0, %v990
    %v992 = vpop.f32.mrf.mxu0
    %993 = vmatprep.mubr.bf16.mxu0 %v677
    %994 = vmatmul.mubr.bf16.gmra.mxu0 %v676
    %v995 = vpop.f32.mrf.mxu0
    %v996 = vadd.f32 0.0, %v995
    %v997 = vpop.f32.mrf.mxu0
    %v998 = vpop.f32.mrf.mxu0
    %v999 = vadd.f32 0.0, %v998
    %v1000 = vpop.f32.mrf.mxu0
    %1001 = vmatprep.mubr.bf16.mxu0 %v679
    %1002 = vmatmul.mubr.bf16.gmra.mxu0 %v678
    %v1003 = vpop.f32.mrf.mxu0
    %v1004 = vadd.f32 0.0, %v1003
    %v1005 = vpop.f32.mrf.mxu0
    %v1006 = vpop.f32.mrf.mxu0
    %v1007 = vadd.f32 0.0, %v1006
    %v1008 = vpop.f32.mrf.mxu0
    %1009 = vmatprep.mubr.bf16.mxu0 %v681
    %1010 = vmatmul.mubr.bf16.gmra.mxu0 %v680
    %v1011 = vpop.f32.mrf.mxu0
    %v1012 = vadd.f32 0.0, %v1011
    %v1013 = vpop.f32.mrf.mxu0
    %v1014 = vpop.f32.mrf.mxu0
    %v1015 = vadd.f32 0.0, %v1014
    %v1016 = vpop.f32.mrf.mxu0
    %1017 = vmatprep.mubr.bf16.mxu0 %v683
    %1018 = vmatmul.mubr.bf16.gmra.mxu0 %v682
    %v1019 = vpop.f32.mrf.mxu0
    %v1020 = vadd.f32 0.0, %v1019
    %v1021 = vpop.f32.mrf.mxu0
    %v1022 = vpop.f32.mrf.mxu0
    %v1023 = vadd.f32 0.0, %v1022
    %v1024 = vpop.f32.mrf.mxu0
    %1025 = vmatprep.mubr.bf16.mxu0 %v685
    %1026 = vmatmul.mubr.bf16.gmra.mxu0 %v684
    %v1027 = vpop.f32.mrf.mxu0
    %v1028 = vadd.f32 0.0, %v1027
    %v1029 = vpop.f32.mrf.mxu0
    %v1030 = vpop.f32.mrf.mxu0
    %v1031 = vadd.f32 0.0, %v1030
    %v1032 = vpop.f32.mrf.mxu0
    %1033 = vmatprep.mubr.bf16.mxu0 %v687
    %1034 = vmatmul.mubr.bf16.gmra.mxu0 %v686
    %v1035 = vpop.f32.mrf.mxu0
    %v1036 = vadd.f32 0.0, %v1035
    %v1037 = vpop.f32.mrf.mxu0
    %v1038 = vpop.f32.mrf.mxu0
    %v1039 = vadd.f32 0.0, %v1038
    %v1040 = vpop.f32.mrf.mxu0
    %1041 = vmatprep.mubr.bf16.mxu0 %v689
    %1042 = vmatmul.mubr.bf16.gmra.mxu0 %v688
    %v1043 = vpop.f32.mrf.mxu0
    %v1044 = vadd.f32 0.0, %v1043
    %v1045 = vpop.f32.mrf.mxu0
    %v1046 = vpop.f32.mrf.mxu0
    %v1047 = vadd.f32 0.0, %v1046
    %v1048 = vpop.f32.mrf.mxu0
    %1049 = vmatprep.mubr.bf16.mxu0 %v691
    %1050 = vmatmul.mubr.bf16.gmra.mxu0 %v690
    %v1051 = vpop.f32.mrf.mxu0
    %v1052 = vadd.f32 0.0, %v1051
    %v1053 = vpop.f32.mrf.mxu0
    %v1054 = vpop.f32.mrf.mxu0
    %v1055 = vadd.f32 0.0, %v1054
    %v1056 = vpop.f32.mrf.mxu0
    %1057 = vmatprep.mubr.bf16.mxu0 %v693
    %1058 = vmatmul.mubr.bf16.gmra.mxu0 %v692
    %v1059 = vpop.f32.mrf.mxu0
    %v1060 = vadd.f32 0.0, %v1059
    %v1061 = vpop.f32.mrf.mxu0
    %v1062 = vpop.f32.mrf.mxu0
    %v1063 = vadd.f32 0.0, %v1062
    %v1064 = vpop.f32.mrf.mxu0
    %1065 = vmatprep.mubr.bf16.mxu0 %v695
    %1066 = vmatmul.mubr.bf16.gmra.mxu0 %v694
    %v1067 = vpop.f32.mrf.mxu0
    %v1068 = vadd.f32 0.0, %v1067
    %v1069 = vpop.f32.mrf.mxu0
    %v1070 = vpop.f32.mrf.mxu0
    %v1071 = vadd.f32 0.0, %v1070
    %v1072 = vpop.f32.mrf.mxu0
    %1073 = vmatprep.mubr.bf16.mxu0 %v697
    %1074 = vmatmul.mubr.bf16.gmra.mxu0 %v696
    %v1075 = vpop.f32.mrf.mxu0
    %v1076 = vadd.f32 0.0, %v1075
    %v1077 = vpop.f32.mrf.mxu0
    %v1078 = vpop.f32.mrf.mxu0
    %v1079 = vadd.f32 0.0, %v1078
    %v1080 = vpop.f32.mrf.mxu0
    %1081 = vmatprep.mubr.bf16.mxu0 %v699
    %1082 = vmatmul.mubr.bf16.gmra.mxu0 %v698
    %v1083 = vpop.f32.mrf.mxu0
    %v1084 = vadd.f32 0.0, %v1083
    %v1085 = vpop.f32.mrf.mxu0
    %v1086 = vpop.f32.mrf.mxu0
    %v1087 = vadd.f32 0.0, %v1086
    %v1088 = vpop.f32.mrf.mxu0
    %1089 = vmatprep.mubr.bf16.mxu0 %v701
    %1090 = vmatmul.mubr.bf16.gmra.mxu0 %v700
    %v1091 = vpop.f32.mrf.mxu0
    %v1092 = vadd.f32 0.0, %v1091
    %v1093 = vpop.f32.mrf.mxu0
    %v1094 = vpop.f32.mrf.mxu0
    %v1095 = vadd.f32 0.0, %v1094
    %v1096 = vpop.f32.mrf.mxu0
    %1097 = vmatprep.mubr.bf16.mxu0 %v703
    %1098 = vmatmul.mubr.bf16.gmra.mxu0 %v702
    %v1099 = vpop.f32.mrf.mxu0
    %v1100 = vadd.f32 0.0, %v1099
    %v1101 = vpop.f32.mrf.mxu0
    %v1102 = vpop.f32.mrf.mxu0
    %v1103 = vadd.f32 0.0, %v1102
    %v1104 = vpop.f32.mrf.mxu0
    %1105 = vmatprep.mubr.bf16.mxu0 %v705
    %1106 = vmatmul.mubr.bf16.gmra.mxu0 %v704
    %v1107 = vpop.f32.mrf.mxu0
    %v1108 = vadd.f32 0.0, %v1107
    %v1109 = vpop.f32.mrf.mxu0
    %v1110 = vpop.f32.mrf.mxu0
    %v1111 = vadd.f32 0.0, %v1110
    %v1112 = vpop.f32.mrf.mxu0
    %1113 = vmatprep.mubr.bf16.mxu0 %v707
    %1114 = vmatmul.mubr.bf16.gmra.mxu0 %v706
    %v1115 = vpop.f32.mrf.mxu0
    %v1116 = vadd.f32 0.0, %v1115
    %v1117 = vpop.f32.mrf.mxu0
    %v1118 = vpop.f32.mrf.mxu0
    %v1119 = vadd.f32 0.0, %v1118
    %v1120 = vpop.f32.mrf.mxu0
    %1121 = vmatprep.mubr.bf16.mxu0 %v709
    %1122 = vmatmul.mubr.bf16.gmra.mxu0 %v708
    %v1123 = vpop.f32.mrf.mxu0
    %v1124 = vadd.f32 0.0, %v1123
    %v1125 = vpop.f32.mrf.mxu0
    %v1126 = vpop.f32.mrf.mxu0
    %v1127 = vadd.f32 0.0, %v1126
    %v1128 = vpop.f32.mrf.mxu0
    %1129 = vmatprep.mubr.bf16.mxu0 %v711
    %1130 = vmatmul.mubr.bf16.gmra.mxu0 %v710
    %v1131 = vpop.f32.mrf.mxu0
    %v1132 = vadd.f32 0.0, %v1131
    %v1133 = vpop.f32.mrf.mxu0
    %v1134 = vpop.f32.mrf.mxu0
    %v1135 = vadd.f32 0.0, %v1134
    %v1136 = vpop.f32.mrf.mxu0
    %1137 = vmatprep.mubr.bf16.mxu0 %v713
    %1138 = vmatmul.mubr.bf16.gmra.mxu0 %v712
    %v1139 = vpop.f32.mrf.mxu0
    %v1140 = vadd.f32 0.0, %v1139
    %v1141 = vpop.f32.mrf.mxu0
    %v1142 = vpop.f32.mrf.mxu0
    %v1143 = vadd.f32 0.0, %v1142
    %v1144 = vpop.f32.mrf.mxu0
    %1145 = vmatprep.mubr.bf16.mxu0 %v715
    %1146 = vmatmul.mubr.bf16.gmra.mxu0 %v714
    %v1147 = vpop.f32.mrf.mxu0
    %v1148 = vadd.f32 0.0, %v1147
    %v1149 = vpop.f32.mrf.mxu0
    %v1150 = vpop.f32.mrf.mxu0
    %v1151 = vadd.f32 0.0, %v1150
    %v1152 = vpop.f32.mrf.mxu0
    %1153 = vmatprep.mubr.bf16.mxu0 %v717
    %1154 = vmatmul.mubr.bf16.gmra.mxu0 %v716
    %v1155 = vpop.f32.mrf.mxu0
    %v1156 = vadd.f32 0.0, %v1155
    %v1157 = vpop.f32.mrf.mxu0
    %v1158 = vpop.f32.mrf.mxu0
    %v1159 = vadd.f32 0.0, %v1158
    %v1160 = vpop.f32.mrf.mxu0
    %1161 = vmatprep.mubr.bf16.mxu0 %v719
    %1162 = vmatmul.mubr.bf16.gmra.mxu0 %v718
    %v1163 = vpop.f32.mrf.mxu0
    %v1164 = vadd.f32 0.0, %v1163
    %v1165 = vpop.f32.mrf.mxu0
    %v1166 = vpop.f32.mrf.mxu0
    %v1167 = vadd.f32 0.0, %v1166
    %v1168 = vpop.f32.mrf.mxu0
    %1169 = vdwg.mxu0
    %v1202 = vunpack.c.l.b16 %v720
    %v1203 = vunpack.c.l.b16 %v721
    %v1204 = vunpack.c.l.b16 %v722
    %v1205 = vunpack.c.l.b16 %v723
    %v1206 = vunpack.c.l.b16 %v724
    %v1207 = vunpack.c.l.b16 %v725
    %v1208 = vunpack.c.l.b16 %v726
    %v1209 = vunpack.c.l.b16 %v727
    %v1210 = vunpack.c.l.b16 %v728
    %v1211 = vunpack.c.l.b16 %v729
    %v1212 = vunpack.c.l.b16 %v730
    %v1213 = vunpack.c.l.b16 %v731
    %v1214 = vunpack.c.l.b16 %v732
    %v1215 = vunpack.c.l.b16 %v733
    %v1216 = vunpack.c.l.b16 %v734
    %v1217 = vunpack.c.l.b16 %v735
    %v1218 = vunpack.c.l.b16 %v736
    %v1219 = vunpack.c.l.b16 %v737
    %v1220 = vunpack.c.l.b16 %v738
    %v1221 = vunpack.c.l.b16 %v739
    %v1222 = vunpack.c.l.b16 %v740
    %v1223 = vunpack.c.l.b16 %v741
    %v1224 = vunpack.c.l.b16 %v742
    %v1225 = vunpack.c.l.b16 %v743
    %v1226 = vunpack.c.l.b16 %v744
    %v1227 = vunpack.c.l.b16 %v745
    %v1228 = vunpack.c.l.b16 %v746
    %v1229 = vunpack.c.l.b16 %v747
    %v1230 = vunpack.c.l.b16 %v748
    %v1231 = vunpack.c.l.b16 %v749
    %v1232 = vunpack.c.l.b16 %v750
    %v1233 = vunpack.c.l.b16 %v751
    %v1234 = vpack.c.b16 %v1203, %v1202
    %v1235 = vpack.c.b16 %v1205, %v1204
    %v1236 = vpack.c.b16 %v1207, %v1206
    %v1237 = vpack.c.b16 %v1209, %v1208
    %v1238 = vpack.c.b16 %v1211, %v1210
    %v1239 = vpack.c.b16 %v1213, %v1212
    %v1240 = vpack.c.b16 %v1215, %v1214
    %v1241 = vpack.c.b16 %v1217, %v1216
    %v1242 = vpack.c.b16 %v1219, %v1218
    %v1243 = vpack.c.b16 %v1221, %v1220
    %v1244 = vpack.c.b16 %v1223, %v1222
    %v1245 = vpack.c.b16 %v1225, %v1224
    %v1246 = vpack.c.b16 %v1227, %v1226
    %v1247 = vpack.c.b16 %v1229, %v1228
    %v1248 = vpack.c.b16 %v1231, %v1230
    %v1249 = vpack.c.b16 %v1233, %v1232
    %1266 = vmatprep.subr.bf16.mxu0 0
    %1267 = vmatpush1.bf16.msra.mxu0 %v1241
    %1268 = vmatprep.subr.bf16.mxu0 0
    %1269 = vmatpush1.bf16.msra.mxu0 %v1240
    %1270 = vmatprep.subr.bf16.mxu0 0
    %1271 = vmatpush1.bf16.msra.mxu0 %v1239
    %1272 = vmatprep.subr.bf16.mxu0 0
    %1273 = vmatpush1.bf16.msra.mxu0 %v1238
    %1274 = vmatprep.subr.bf16.mxu0 0
    %1275 = vmatpush1.bf16.msra.mxu0 %v1237
    %1276 = vmatprep.subr.bf16.mxu0 0
    %1277 = vmatpush1.bf16.msra.mxu0 %v1236
    %1278 = vmatprep.subr.bf16.mxu0 0
    %1279 = vmatpush1.bf16.msra.mxu0 %v1235
    %1280 = vmatprep.subr.bf16.mxu0 0
    %1281 = vmatpush1.bf16.msra.mxu0 %v1234
    %1282 = vmatprep.subr.bf16.mxu0 0
    %1283 = vmatpush2.bf16.msra.mxu0 %v1249
    %1284 = vmatprep.subr.bf16.mxu0 0
    %1285 = vmatpush2.bf16.msra.mxu0 %v1248
    %1286 = vmatprep.subr.bf16.mxu0 0
    %1287 = vmatpush2.bf16.msra.mxu0 %v1247
    %1288 = vmatprep.subr.bf16.mxu0 0
    %1289 = vmatpush2.bf16.msra.mxu0 %v1246
    %1290 = vmatprep.subr.bf16.mxu0 0
    %1291 = vmatpush2.bf16.msra.mxu0 %v1245
    %1292 = vmatprep.subr.bf16.mxu0 0
    %1293 = vmatpush2.bf16.msra.mxu0 %v1244
    %1294 = vmatprep.subr.bf16.mxu0 0
    %1295 = vmatpush2.bf16.msra.mxu0 %v1243
    %1296 = vmatprep.subr.bf16.mxu0 0
    %1297 = vmatpush2.bf16.msra.mxu0 %v1242
    %1298 = vmatprep.mubr.bf16.mxu0 %v657
    %1299 = vmatmul.mubr.bf16.gmra.mxu0 %v656
    %v1300 = vpop.f32.mrf.mxu0
    %v1301 = vadd.f32 %v916, %v1300
    %v1302 = vpop.f32.mrf.mxu0
    %v1303 = vpop.f32.mrf.mxu0
    %v1304 = vadd.f32 %v919, %v1303
    %v1305 = vpop.f32.mrf.mxu0
    %1306 = vmatprep.mubr.bf16.mxu0 %v659
    %1307 = vmatmul.mubr.bf16.gmra.mxu0 %v658
    %v1308 = vpop.f32.mrf.mxu0
    %v1309 = vadd.f32 %v924, %v1308
    %v1310 = vpop.f32.mrf.mxu0
    %v1311 = vpop.f32.mrf.mxu0
    %v1312 = vadd.f32 %v927, %v1311
    %v1313 = vpop.f32.mrf.mxu0
    %1314 = vmatprep.mubr.bf16.mxu0 %v661
    %1315 = vmatmul.mubr.bf16.gmra.mxu0 %v660
    %v1316 = vpop.f32.mrf.mxu0
    %v1317 = vadd.f32 %v932, %v1316
    %v1318 = vpop.f32.mrf.mxu0
    %v1319 = vpop.f32.mrf.mxu0
    %v1320 = vadd.f32 %v935, %v1319
    %v1321 = vpop.f32.mrf.mxu0
    %1322 = vmatprep.mubr.bf16.mxu0 %v663
    %1323 = vmatmul.mubr.bf16.gmra.mxu0 %v662
    %v1324 = vpop.f32.mrf.mxu0
    %v1325 = vadd.f32 %v940, %v1324
    %v1326 = vpop.f32.mrf.mxu0
    %v1327 = vpop.f32.mrf.mxu0
    %v1328 = vadd.f32 %v943, %v1327
    %v1329 = vpop.f32.mrf.mxu0
    %1330 = vmatprep.mubr.bf16.mxu0 %v665
    %1331 = vmatmul.mubr.bf16.gmra.mxu0 %v664
    %v1332 = vpop.f32.mrf.mxu0
    %v1333 = vadd.f32 %v948, %v1332
    %v1334 = vpop.f32.mrf.mxu0
    %v1335 = vpop.f32.mrf.mxu0
    %v1336 = vadd.f32 %v951, %v1335
    %v1337 = vpop.f32.mrf.mxu0
    %1338 = vmatprep.mubr.bf16.mxu0 %v667
    %1339 = vmatmul.mubr.bf16.gmra.mxu0 %v666
    %v1340 = vpop.f32.mrf.mxu0
    %v1341 = vadd.f32 %v956, %v1340
    %v1342 = vpop.f32.mrf.mxu0
    %v1343 = vpop.f32.mrf.mxu0
    %v1344 = vadd.f32 %v959, %v1343
    %v1345 = vpop.f32.mrf.mxu0
    %1346 = vmatprep.mubr.bf16.mxu0 %v669
    %1347 = vmatmul.mubr.bf16.gmra.mxu0 %v668
    %v1348 = vpop.f32.mrf.mxu0
    %v1349 = vadd.f32 %v964, %v1348
    %v1350 = vpop.f32.mrf.mxu0
    %v1351 = vpop.f32.mrf.mxu0
    %v1352 = vadd.f32 %v967, %v1351
    %v1353 = vpop.f32.mrf.mxu0
    %1354 = vmatprep.mubr.bf16.mxu0 %v671
    %1355 = vmatmul.mubr.bf16.gmra.mxu0 %v670
    %v1356 = vpop.f32.mrf.mxu0
    %v1357 = vadd.f32 %v972, %v1356
    %v1358 = vpop.f32.mrf.mxu0
    %v1359 = vpop.f32.mrf.mxu0
    %v1360 = vadd.f32 %v975, %v1359
    %v1361 = vpop.f32.mrf.mxu0
    %1362 = vmatprep.mubr.bf16.mxu0 %v673
    %1363 = vmatmul.mubr.bf16.gmra.mxu0 %v672
    %v1364 = vpop.f32.mrf.mxu0
    %v1365 = vadd.f32 %v980, %v1364
    %v1366 = vpop.f32.mrf.mxu0
    %v1367 = vpop.f32.mrf.mxu0
    %v1368 = vadd.f32 %v983, %v1367
    %v1369 = vpop.f32.mrf.mxu0
    %1370 = vmatprep.mubr.bf16.mxu0 %v675
    %1371 = vmatmul.mubr.bf16.gmra.mxu0 %v674
    %v1372 = vpop.f32.mrf.mxu0
    %v1373 = vadd.f32 %v988, %v1372
    %v1374 = vpop.f32.mrf.mxu0
    %v1375 = vpop.f32.mrf.mxu0
    %v1376 = vadd.f32 %v991, %v1375
    %v1377 = vpop.f32.mrf.mxu0
    %1378 = vmatprep.mubr.bf16.mxu0 %v677
    %1379 = vmatmul.mubr.bf16.gmra.mxu0 %v676
    %v1380 = vpop.f32.mrf.mxu0
    %v1381 = vadd.f32 %v996, %v1380
    %v1382 = vpop.f32.mrf.mxu0
    %v1383 = vpop.f32.mrf.mxu0
    %v1384 = vadd.f32 %v999, %v1383
    %v1385 = vpop.f32.mrf.mxu0
    %1386 = vmatprep.mubr.bf16.mxu0 %v679
    %1387 = vmatmul.mubr.bf16.gmra.mxu0 %v678
    %v1388 = vpop.f32.mrf.mxu0
    %v1389 = vadd.f32 %v1004, %v1388
    %v1390 = vpop.f32.mrf.mxu0
    %v1391 = vpop.f32.mrf.mxu0
    %v1392 = vadd.f32 %v1007, %v1391
    %v1393 = vpop.f32.mrf.mxu0
    %1394 = vmatprep.mubr.bf16.mxu0 %v681
    %1395 = vmatmul.mubr.bf16.gmra.mxu0 %v680
    %v1396 = vpop.f32.mrf.mxu0
    %v1397 = vadd.f32 %v1012, %v1396
    %v1398 = vpop.f32.mrf.mxu0
    %v1399 = vpop.f32.mrf.mxu0
    %v1400 = vadd.f32 %v1015, %v1399
    %v1401 = vpop.f32.mrf.mxu0
    %1402 = vmatprep.mubr.bf16.mxu0 %v683
    %1403 = vmatmul.mubr.bf16.gmra.mxu0 %v682
    %v1404 = vpop.f32.mrf.mxu0
    %v1405 = vadd.f32 %v1020, %v1404
    %v1406 = vpop.f32.mrf.mxu0
    %v1407 = vpop.f32.mrf.mxu0
    %v1408 = vadd.f32 %v1023, %v1407
    %v1409 = vpop.f32.mrf.mxu0
    %1410 = vmatprep.mubr.bf16.mxu0 %v685
    %1411 = vmatmul.mubr.bf16.gmra.mxu0 %v684
    %v1412 = vpop.f32.mrf.mxu0
    %v1413 = vadd.f32 %v1028, %v1412
    %v1414 = vpop.f32.mrf.mxu0
    %v1415 = vpop.f32.mrf.mxu0
    %v1416 = vadd.f32 %v1031, %v1415
    %v1417 = vpop.f32.mrf.mxu0
    %1418 = vmatprep.mubr.bf16.mxu0 %v687
    %1419 = vmatmul.mubr.bf16.gmra.mxu0 %v686
    %v1420 = vpop.f32.mrf.mxu0
    %v1421 = vadd.f32 %v1036, %v1420
    %v1422 = vpop.f32.mrf.mxu0
    %v1423 = vpop.f32.mrf.mxu0
    %v1424 = vadd.f32 %v1039, %v1423
    %v1425 = vpop.f32.mrf.mxu0
    %1426 = vmatprep.mubr.bf16.mxu0 %v689
    %1427 = vmatmul.mubr.bf16.gmra.mxu0 %v688
    %v1428 = vpop.f32.mrf.mxu0
    %v1429 = vadd.f32 %v1044, %v1428
    %v1430 = vpop.f32.mrf.mxu0
    %v1431 = vpop.f32.mrf.mxu0
    %v1432 = vadd.f32 %v1047, %v1431
    %v1433 = vpop.f32.mrf.mxu0
    %1434 = vmatprep.mubr.bf16.mxu0 %v691
    %1435 = vmatmul.mubr.bf16.gmra.mxu0 %v690
    %v1436 = vpop.f32.mrf.mxu0
    %v1437 = vadd.f32 %v1052, %v1436
    %v1438 = vpop.f32.mrf.mxu0
    %v1439 = vpop.f32.mrf.mxu0
    %v1440 = vadd.f32 %v1055, %v1439
    %v1441 = vpop.f32.mrf.mxu0
    %1442 = vmatprep.mubr.bf16.mxu0 %v693
    %1443 = vmatmul.mubr.bf16.gmra.mxu0 %v692
    %v1444 = vpop.f32.mrf.mxu0
    %v1445 = vadd.f32 %v1060, %v1444
    %v1446 = vpop.f32.mrf.mxu0
    %v1447 = vpop.f32.mrf.mxu0
    %v1448 = vadd.f32 %v1063, %v1447
    %v1449 = vpop.f32.mrf.mxu0
    %1450 = vmatprep.mubr.bf16.mxu0 %v695
    %1451 = vmatmul.mubr.bf16.gmra.mxu0 %v694
    %v1452 = vpop.f32.mrf.mxu0
    %v1453 = vadd.f32 %v1068, %v1452
    %v1454 = vpop.f32.mrf.mxu0
    %v1455 = vpop.f32.mrf.mxu0
    %v1456 = vadd.f32 %v1071, %v1455
    %v1457 = vpop.f32.mrf.mxu0
    %1458 = vmatprep.mubr.bf16.mxu0 %v697
    %1459 = vmatmul.mubr.bf16.gmra.mxu0 %v696
    %v1460 = vpop.f32.mrf.mxu0
    %v1461 = vadd.f32 %v1076, %v1460
    %v1462 = vpop.f32.mrf.mxu0
    %v1463 = vpop.f32.mrf.mxu0
    %v1464 = vadd.f32 %v1079, %v1463
    %v1465 = vpop.f32.mrf.mxu0
    %1466 = vmatprep.mubr.bf16.mxu0 %v699
    %1467 = vmatmul.mubr.bf16.gmra.mxu0 %v698
    %v1468 = vpop.f32.mrf.mxu0
    %v1469 = vadd.f32 %v1084, %v1468
    %v1470 = vpop.f32.mrf.mxu0
    %v1471 = vpop.f32.mrf.mxu0
    %v1472 = vadd.f32 %v1087, %v1471
    %v1473 = vpop.f32.mrf.mxu0
    %1474 = vmatprep.mubr.bf16.mxu0 %v701
    %1475 = vmatmul.mubr.bf16.gmra.mxu0 %v700
    %v1476 = vpop.f32.mrf.mxu0
    %v1477 = vadd.f32 %v1092, %v1476
    %v1478 = vpop.f32.mrf.mxu0
    %v1479 = vpop.f32.mrf.mxu0
    %v1480 = vadd.f32 %v1095, %v1479
    %v1481 = vpop.f32.mrf.mxu0
    %1482 = vmatprep.mubr.bf16.mxu0 %v703
    %1483 = vmatmul.mubr.bf16.gmra.mxu0 %v702
    %v1484 = vpop.f32.mrf.mxu0
    %v1485 = vadd.f32 %v1100, %v1484
    %v1486 = vpop.f32.mrf.mxu0
    %v1487 = vpop.f32.mrf.mxu0
    %v1488 = vadd.f32 %v1103, %v1487
    %v1489 = vpop.f32.mrf.mxu0
    %1490 = vmatprep.mubr.bf16.mxu0 %v705
    %1491 = vmatmul.mubr.bf16.gmra.mxu0 %v704
    %v1492 = vpop.f32.mrf.mxu0
    %v1493 = vadd.f32 %v1108, %v1492
    %v1494 = vpop.f32.mrf.mxu0
    %v1495 = vpop.f32.mrf.mxu0
    %v1496 = vadd.f32 %v1111, %v1495
    %v1497 = vpop.f32.mrf.mxu0
    %1498 = vmatprep.mubr.bf16.mxu0 %v707
    %1499 = vmatmul.mubr.bf16.gmra.mxu0 %v706
    %v1500 = vpop.f32.mrf.mxu0
    %v1501 = vadd.f32 %v1116, %v1500
    %v1502 = vpop.f32.mrf.mxu0
    %v1503 = vpop.f32.mrf.mxu0
    %v1504 = vadd.f32 %v1119, %v1503
    %v1505 = vpop.f32.mrf.mxu0
    %1506 = vmatprep.mubr.bf16.mxu0 %v709
    %1507 = vmatmul.mubr.bf16.gmra.mxu0 %v708
    %v1508 = vpop.f32.mrf.mxu0
    %v1509 = vadd.f32 %v1124, %v1508
    %v1510 = vpop.f32.mrf.mxu0
    %v1511 = vpop.f32.mrf.mxu0
    %v1512 = vadd.f32 %v1127, %v1511
    %v1513 = vpop.f32.mrf.mxu0
    %1514 = vmatprep.mubr.bf16.mxu0 %v711
    %1515 = vmatmul.mubr.bf16.gmra.mxu0 %v710
    %v1516 = vpop.f32.mrf.mxu0
    %v1517 = vadd.f32 %v1132, %v1516
    %v1518 = vpop.f32.mrf.mxu0
    %v1519 = vpop.f32.mrf.mxu0
    %v1520 = vadd.f32 %v1135, %v1519
    %v1521 = vpop.f32.mrf.mxu0
    %1522 = vmatprep.mubr.bf16.mxu0 %v713
    %1523 = vmatmul.mubr.bf16.gmra.mxu0 %v712
    %v1524 = vpop.f32.mrf.mxu0
    %v1525 = vadd.f32 %v1140, %v1524
    %v1526 = vpop.f32.mrf.mxu0
    %v1527 = vpop.f32.mrf.mxu0
    %v1528 = vadd.f32 %v1143, %v1527
    %v1529 = vpop.f32.mrf.mxu0
    %1530 = vmatprep.mubr.bf16.mxu0 %v715
    %1531 = vmatmul.mubr.bf16.gmra.mxu0 %v714
    %v1532 = vpop.f32.mrf.mxu0
    %v1533 = vadd.f32 %v1148, %v1532
    %v1534 = vpop.f32.mrf.mxu0
    %v1535 = vpop.f32.mrf.mxu0
    %v1536 = vadd.f32 %v1151, %v1535
    %v1537 = vpop.f32.mrf.mxu0
    %1538 = vmatprep.mubr.bf16.mxu0 %v717
    %1539 = vmatmul.mubr.bf16.gmra.mxu0 %v716
    %v1540 = vpop.f32.mrf.mxu0
    %v1541 = vadd.f32 %v1156, %v1540
    %v1542 = vpop.f32.mrf.mxu0
    %v1543 = vpop.f32.mrf.mxu0
    %v1544 = vadd.f32 %v1159, %v1543
    %v1545 = vpop.f32.mrf.mxu0
    %1546 = vmatprep.mubr.bf16.mxu0 %v719
    %1547 = vmatmul.mubr.bf16.gmra.mxu0 %v718
    %v1548 = vpop.f32.mrf.mxu0
    %v1549 = vadd.f32 %v1164, %v1548
    %v1550 = vpop.f32.mrf.mxu0
    %v1551 = vpop.f32.mrf.mxu0
    %v1552 = vadd.f32 %v1167, %v1551
    %v1553 = vpop.f32.mrf.mxu0
    %1554 = vdwg.mxu0
    %s1555 = scalar_lea.vmem %s1, 256
    %v1556 = vld [vmem:[%s1555] sm:$0xf]
    %v1557 = vld [vmem:[%s1555 + $0x4] sm:$0xf]
    %v1558 = vld [vmem:[%s1555 + $0x8] sm:$0xf]
    %v1559 = vld [vmem:[%s1555 + $0xc] sm:$0xf]
    %v1560 = vld [vmem:[%s1555 + $0x10] sm:$0xf]
    %v1561 = vld [vmem:[%s1555 + $0x14] sm:$0xf]
    %v1562 = vld [vmem:[%s1555 + $0x18] sm:$0xf]
    %v1563 = vld [vmem:[%s1555 + $0x1c] sm:$0xf]
    %v1564 = vld [vmem:[%s1555 + $0x20] sm:$0xf]
    %v1565 = vld [vmem:[%s1555 + $0x24] sm:$0xf]
    %v1566 = vld [vmem:[%s1555 + $0x28] sm:$0xf]
    %v1567 = vld [vmem:[%s1555 + $0x2c] sm:$0xf]
    %v1568 = vld [vmem:[%s1555 + $0x30] sm:$0xf]
    %v1569 = vld [vmem:[%s1555 + $0x34] sm:$0xf]
    %v1570 = vld [vmem:[%s1555 + $0x38] sm:$0xf]
    %v1571 = vld [vmem:[%s1555 + $0x3c] sm:$0xf]
    %v1572 = vld [vmem:[%s1555 + $0x40] sm:$0xf]
    %v1573 = vld [vmem:[%s1555 + $0x44] sm:$0xf]
    %v1574 = vld [vmem:[%s1555 + $0x48] sm:$0xf]
    %v1575 = vld [vmem:[%s1555 + $0x4c] sm:$0xf]
    %v1576 = vld [vmem:[%s1555 + $0x50] sm:$0xf]
    %v1577 = vld [vmem:[%s1555 + $0x54] sm:$0xf]
    %v1578 = vld [vmem:[%s1555 + $0x58] sm:$0xf]
    %v1579 = vld [vmem:[%s1555 + $0x5c] sm:$0xf]
    %v1580 = vld [vmem:[%s1555 + $0x60] sm:$0xf]
    %v1581 = vld [vmem:[%s1555 + $0x64] sm:$0xf]
    %v1582 = vld [vmem:[%s1555 + $0x68] sm:$0xf]
    %v1583 = vld [vmem:[%s1555 + $0x6c] sm:$0xf]
    %v1584 = vld [vmem:[%s1555 + $0x70] sm:$0xf]
    %v1585 = vld [vmem:[%s1555 + $0x74] sm:$0xf]
    %v1586 = vld [vmem:[%s1555 + $0x78] sm:$0xf]
    %v1587 = vld [vmem:[%s1555 + $0x7c] sm:$0xf]
    %v1620 = vunpack.c.l.b16 %v1556
    %v1621 = vunpack.c.l.b16 %v1557
    %v1622 = vunpack.c.l.b16 %v1558
    %v1623 = vunpack.c.l.b16 %v1559
    %v1624 = vunpack.c.l.b16 %v1560
    %v1625 = vunpack.c.l.b16 %v1561
    %v1626 = vunpack.c.l.b16 %v1562
    %v1627 = vunpack.c.l.b16 %v1563
    %v1628 = vunpack.c.l.b16 %v1564
    %v1629 = vunpack.c.l.b16 %v1565
    %v1630 = vunpack.c.l.b16 %v1566
    %v1631 = vunpack.c.l.b16 %v1567
    %v1632 = vunpack.c.l.b16 %v1568
    %v1633 = vunpack.c.l.b16 %v1569
    %v1634 = vunpack.c.l.b16 %v1570
    %v1635 = vunpack.c.l.b16 %v1571
    %v1636 = vunpack.c.l.b16 %v1572
    %v1637 = vunpack.c.l.b16 %v1573
    %v1638 = vunpack.c.l.b16 %v1574
    %v1639 = vunpack.c.l.b16 %v1575
    %v1640 = vunpack.c.l.b16 %v1576
    %v1641 = vunpack.c.l.b16 %v1577
    %v1642 = vunpack.c.l.b16 %v1578
    %v1643 = vunpack.c.l.b16 %v1579
    %v1644 = vunpack.c.l.b16 %v1580
    %v1645 = vunpack.c.l.b16 %v1581
    %v1646 = vunpack.c.l.b16 %v1582
    %v1647 = vunpack.c.l.b16 %v1583
    %v1648 = vunpack.c.l.b16 %v1584
    %v1649 = vunpack.c.l.b16 %v1585
    %v1650 = vunpack.c.l.b16 %v1586
    %v1651 = vunpack.c.l.b16 %v1587
    %v1652 = vpack.c.b16 %v1621, %v1620
    %v1653 = vpack.c.b16 %v1623, %v1622
    %v1654 = vpack.c.b16 %v1625, %v1624
    %v1655 = vpack.c.b16 %v1627, %v1626
    %v1656 = vpack.c.b16 %v1629, %v1628
    %v1657 = vpack.c.b16 %v1631, %v1630
    %v1658 = vpack.c.b16 %v1633, %v1632
    %v1659 = vpack.c.b16 %v1635, %v1634
    %v1660 = vpack.c.b16 %v1637, %v1636
    %v1661 = vpack.c.b16 %v1639, %v1638
    %v1662 = vpack.c.b16 %v1641, %v1640
    %v1663 = vpack.c.b16 %v1643, %v1642
    %v1664 = vpack.c.b16 %v1645, %v1644
    %v1665 = vpack.c.b16 %v1647, %v1646
    %v1666 = vpack.c.b16 %v1649, %v1648
    %v1667 = vpack.c.b16 %v1651, %v1650
    %1684 = vmatprep.subr.bf16.mxu0 0
    %1685 = vmatpush1.bf16.msra.mxu0 %v1659
    %1686 = vmatprep.subr.bf16.mxu0 0
    %1687 = vmatpush1.bf16.msra.mxu0 %v1658
    %1688 = vmatprep.subr.bf16.mxu0 0
    %1689 = vmatpush1.bf16.msra.mxu0 %v1657
    %1690 = vmatprep.subr.bf16.mxu0 0
    %1691 = vmatpush1.bf16.msra.mxu0 %v1656
    %1692 = vmatprep.subr.bf16.mxu0 0
    %1693 = vmatpush1.bf16.msra.mxu0 %v1655
    %1694 = vmatprep.subr.bf16.mxu0 0
    %1695 = vmatpush1.bf16.msra.mxu0 %v1654
    %1696 = vmatprep.subr.bf16.mxu0 0
    %1697 = vmatpush1.bf16.msra.mxu0 %v1653
    %1698 = vmatprep.subr.bf16.mxu0 0
    %1699 = vmatpush1.bf16.msra.mxu0 %v1652
    %1700 = vmatprep.subr.bf16.mxu0 0
    %1701 = vmatpush2.bf16.msra.mxu0 %v1667
    %1702 = vmatprep.subr.bf16.mxu0 0
    %1703 = vmatpush2.bf16.msra.mxu0 %v1666
    %1704 = vmatprep.subr.bf16.mxu0 0
    %1705 = vmatpush2.bf16.msra.mxu0 %v1665
    %1706 = vmatprep.subr.bf16.mxu0 0
    %1707 = vmatpush2.bf16.msra.mxu0 %v1664
    %1708 = vmatprep.subr.bf16.mxu0 0
    %1709 = vmatpush2.bf16.msra.mxu0 %v1663
    %1710 = vmatprep.subr.bf16.mxu0 0
    %1711 = vmatpush2.bf16.msra.mxu0 %v1662
    %1712 = vmatprep.subr.bf16.mxu0 0
    %1713 = vmatpush2.bf16.msra.mxu0 %v1661
    %1714 = vmatprep.subr.bf16.mxu0 0
    %1715 = vmatpush2.bf16.msra.mxu0 %v1660
    %1716 = vmatprep.mubr.bf16.mxu0 %v657
    %1717 = vmatmul.mubr.bf16.gmra.mxu0 %v656
    %v1718 = vpop.f32.mrf.mxu0
    %v1719 = vadd.f32 0.0, %v1718
    %v1720 = vpop.f32.mrf.mxu0
    %v1721 = vpop.f32.mrf.mxu0
    %v1722 = vadd.f32 0.0, %v1721
    %v1723 = vpop.f32.mrf.mxu0
    %1724 = vmatprep.mubr.bf16.mxu0 %v659
    %1725 = vmatmul.mubr.bf16.gmra.mxu0 %v658
    %v1726 = vpop.f32.mrf.mxu0
    %v1727 = vadd.f32 0.0, %v1726
    %v1728 = vpop.f32.mrf.mxu0
    %v1729 = vpop.f32.mrf.mxu0
    %v1730 = vadd.f32 0.0, %v1729
    %v1731 = vpop.f32.mrf.mxu0
    %1732 = vmatprep.mubr.bf16.mxu0 %v661
    %1733 = vmatmul.mubr.bf16.gmra.mxu0 %v660
    %v1734 = vpop.f32.mrf.mxu0
    %v1735 = vadd.f32 0.0, %v1734
    %v1736 = vpop.f32.mrf.mxu0
    %v1737 = vpop.f32.mrf.mxu0
    %v1738 = vadd.f32 0.0, %v1737
    %v1739 = vpop.f32.mrf.mxu0
    %1740 = vmatprep.mubr.bf16.mxu0 %v663
    %1741 = vmatmul.mubr.bf16.gmra.mxu0 %v662
    %v1742 = vpop.f32.mrf.mxu0
    %v1743 = vadd.f32 0.0, %v1742
    %v1744 = vpop.f32.mrf.mxu0
    %v1745 = vpop.f32.mrf.mxu0
    %v1746 = vadd.f32 0.0, %v1745
    %v1747 = vpop.f32.mrf.mxu0
    %1748 = vmatprep.mubr.bf16.mxu0 %v665
    %1749 = vmatmul.mubr.bf16.gmra.mxu0 %v664
    %v1750 = vpop.f32.mrf.mxu0
    %v1751 = vadd.f32 0.0, %v1750
    %v1752 = vpop.f32.mrf.mxu0
    %v1753 = vpop.f32.mrf.mxu0
    %v1754 = vadd.f32 0.0, %v1753
    %v1755 = vpop.f32.mrf.mxu0
    %1756 = vmatprep.mubr.bf16.mxu0 %v667
    %1757 = vmatmul.mubr.bf16.gmra.mxu0 %v666
    %v1758 = vpop.f32.mrf.mxu0
    %v1759 = vadd.f32 0.0, %v1758
    %v1760 = vpop.f32.mrf.mxu0
    %v1761 = vpop.f32.mrf.mxu0
    %v1762 = vadd.f32 0.0, %v1761
    %v1763 = vpop.f32.mrf.mxu0
    %1764 = vmatprep.mubr.bf16.mxu0 %v669
    %1765 = vmatmul.mubr.bf16.gmra.mxu0 %v668
    %v1766 = vpop.f32.mrf.mxu0
    %v1767 = vadd.f32 0.0, %v1766
    %v1768 = vpop.f32.mrf.mxu0
    %v1769 = vpop.f32.mrf.mxu0
    %v1770 = vadd.f32 0.0, %v1769
    %v1771 = vpop.f32.mrf.mxu0
    %1772 = vmatprep.mubr.bf16.mxu0 %v671
    %1773 = vmatmul.mubr.bf16.gmra.mxu0 %v670
    %v1774 = vpop.f32.mrf.mxu0
    %v1775 = vadd.f32 0.0, %v1774
    %v1776 = vpop.f32.mrf.mxu0
    %v1777 = vpop.f32.mrf.mxu0
    %v1778 = vadd.f32 0.0, %v1777
    %v1779 = vpop.f32.mrf.mxu0
    %1780 = vmatprep.mubr.bf16.mxu0 %v673
    %1781 = vmatmul.mubr.bf16.gmra.mxu0 %v672
    %v1782 = vpop.f32.mrf.mxu0
    %v1783 = vadd.f32 0.0, %v1782
    %v1784 = vpop.f32.mrf.mxu0
    %v1785 = vpop.f32.mrf.mxu0
    %v1786 = vadd.f32 0.0, %v1785
    %v1787 = vpop.f32.mrf.mxu0
    %1788 = vmatprep.mubr.bf16.mxu0 %v675
    %1789 = vmatmul.mubr.bf16.gmra.mxu0 %v674
    %v1790 = vpop.f32.mrf.mxu0
    %v1791 = vadd.f32 0.0, %v1790
    %v1792 = vpop.f32.mrf.mxu0
    %v1793 = vpop.f32.mrf.mxu0
    %v1794 = vadd.f32 0.0, %v1793
    %v1795 = vpop.f32.mrf.mxu0
    %1796 = vmatprep.mubr.bf16.mxu0 %v677
    %1797 = vmatmul.mubr.bf16.gmra.mxu0 %v676
    %v1798 = vpop.f32.mrf.mxu0
    %v1799 = vadd.f32 0.0, %v1798
    %v1800 = vpop.f32.mrf.mxu0
    %v1801 = vpop.f32.mrf.mxu0
    %v1802 = vadd.f32 0.0, %v1801
    %v1803 = vpop.f32.mrf.mxu0
    %1804 = vmatprep.mubr.bf16.mxu0 %v679
    %1805 = vmatmul.mubr.bf16.gmra.mxu0 %v678
    %v1806 = vpop.f32.mrf.mxu0
    %v1807 = vadd.f32 0.0, %v1806
    %v1808 = vpop.f32.mrf.mxu0
    %v1809 = vpop.f32.mrf.mxu0
    %v1810 = vadd.f32 0.0, %v1809
    %v1811 = vpop.f32.mrf.mxu0
    %1812 = vmatprep.mubr.bf16.mxu0 %v681
    %1813 = vmatmul.mubr.bf16.gmra.mxu0 %v680
    %v1814 = vpop.f32.mrf.mxu0
    %v1815 = vadd.f32 0.0, %v1814
    %v1816 = vpop.f32.mrf.mxu0
    %v1817 = vpop.f32.mrf.mxu0
    %v1818 = vadd.f32 0.0, %v1817
    %v1819 = vpop.f32.mrf.mxu0
    %1820 = vmatprep.mubr.bf16.mxu0 %v683
    %1821 = vmatmul.mubr.bf16.gmra.mxu0 %v682
    %v1822 = vpop.f32.mrf.mxu0
    %v1823 = vadd.f32 0.0, %v1822
    %v1824 = vpop.f32.mrf.mxu0
    %v1825 = vpop.f32.mrf.mxu0
    %v1826 = vadd.f32 0.0, %v1825
    %v1827 = vpop.f32.mrf.mxu0
    %1828 = vmatprep.mubr.bf16.mxu0 %v685
    %1829 = vmatmul.mubr.bf16.gmra.mxu0 %v684
    %v1830 = vpop.f32.mrf.mxu0
    %v1831 = vadd.f32 0.0, %v1830
    %v1832 = vpop.f32.mrf.mxu0
    %v1833 = vpop.f32.mrf.mxu0
    %v1834 = vadd.f32 0.0, %v1833
    %v1835 = vpop.f32.mrf.mxu0
    %1836 = vmatprep.mubr.bf16.mxu0 %v687
    %1837 = vmatmul.mubr.bf16.gmra.mxu0 %v686
    %v1838 = vpop.f32.mrf.mxu0
    %v1839 = vadd.f32 0.0, %v1838
    %v1840 = vpop.f32.mrf.mxu0
    %v1841 = vpop.f32.mrf.mxu0
    %v1842 = vadd.f32 0.0, %v1841
    %v1843 = vpop.f32.mrf.mxu0
    %1844 = vmatprep.mubr.bf16.mxu0 %v689
    %1845 = vmatmul.mubr.bf16.gmra.mxu0 %v688
    %v1846 = vpop.f32.mrf.mxu0
    %v1847 = vadd.f32 0.0, %v1846
    %v1848 = vpop.f32.mrf.mxu0
    %v1849 = vpop.f32.mrf.mxu0
    %v1850 = vadd.f32 0.0, %v1849
    %v1851 = vpop.f32.mrf.mxu0
    %1852 = vmatprep.mubr.bf16.mxu0 %v691
    %1853 = vmatmul.mubr.bf16.gmra.mxu0 %v690
    %v1854 = vpop.f32.mrf.mxu0
    %v1855 = vadd.f32 0.0, %v1854
    %v1856 = vpop.f32.mrf.mxu0
    %v1857 = vpop.f32.mrf.mxu0
    %v1858 = vadd.f32 0.0, %v1857
    %v1859 = vpop.f32.mrf.mxu0
    %1860 = vmatprep.mubr.bf16.mxu0 %v693
    %1861 = vmatmul.mubr.bf16.gmra.mxu0 %v692
    %v1862 = vpop.f32.mrf.mxu0
    %v1863 = vadd.f32 0.0, %v1862
    %v1864 = vpop.f32.mrf.mxu0
    %v1865 = vpop.f32.mrf.mxu0
    %v1866 = vadd.f32 0.0, %v1865
    %v1867 = vpop.f32.mrf.mxu0
    %1868 = vmatprep.mubr.bf16.mxu0 %v695
    %1869 = vmatmul.mubr.bf16.gmra.mxu0 %v694
    %v1870 = vpop.f32.mrf.mxu0
    %v1871 = vadd.f32 0.0, %v1870
    %v1872 = vpop.f32.mrf.mxu0
    %v1873 = vpop.f32.mrf.mxu0
    %v1874 = vadd.f32 0.0, %v1873
    %v1875 = vpop.f32.mrf.mxu0
    %1876 = vmatprep.mubr.bf16.mxu0 %v697
    %1877 = vmatmul.mubr.bf16.gmra.mxu0 %v696
    %v1878 = vpop.f32.mrf.mxu0
    %v1879 = vadd.f32 0.0, %v1878
    %v1880 = vpop.f32.mrf.mxu0
    %v1881 = vpop.f32.mrf.mxu0
    %v1882 = vadd.f32 0.0, %v1881
    %v1883 = vpop.f32.mrf.mxu0
    %1884 = vmatprep.mubr.bf16.mxu0 %v699
    %1885 = vmatmul.mubr.bf16.gmra.mxu0 %v698
    %v1886 = vpop.f32.mrf.mxu0
    %v1887 = vadd.f32 0.0, %v1886
    %v1888 = vpop.f32.mrf.mxu0
    %v1889 = vpop.f32.mrf.mxu0
    %v1890 = vadd.f32 0.0, %v1889
    %v1891 = vpop.f32.mrf.mxu0
    %1892 = vmatprep.mubr.bf16.mxu0 %v701
    %1893 = vmatmul.mubr.bf16.gmra.mxu0 %v700
    %v1894 = vpop.f32.mrf.mxu0
    %v1895 = vadd.f32 0.0, %v1894
    %v1896 = vpop.f32.mrf.mxu0
    %v1897 = vpop.f32.mrf.mxu0
    %v1898 = vadd.f32 0.0, %v1897
    %v1899 = vpop.f32.mrf.mxu0
    %1900 = vmatprep.mubr.bf16.mxu0 %v703
    %1901 = vmatmul.mubr.bf16.gmra.mxu0 %v702
    %v1902 = vpop.f32.mrf.mxu0
    %v1903 = vadd.f32 0.0, %v1902
    %v1904 = vpop.f32.mrf.mxu0
    %v1905 = vpop.f32.mrf.mxu0
    %v1906 = vadd.f32 0.0, %v1905
    %v1907 = vpop.f32.mrf.mxu0
    %1908 = vmatprep.mubr.bf16.mxu0 %v705
    %1909 = vmatmul.mubr.bf16.gmra.mxu0 %v704
    %v1910 = vpop.f32.mrf.mxu0
    %v1911 = vadd.f32 0.0, %v1910
    %v1912 = vpop.f32.mrf.mxu0
    %v1913 = vpop.f32.mrf.mxu0
    %v1914 = vadd.f32 0.0, %v1913
    %v1915 = vpop.f32.mrf.mxu0
    %1916 = vmatprep.mubr.bf16.mxu0 %v707
    %1917 = vmatmul.mubr.bf16.gmra.mxu0 %v706
    %v1918 = vpop.f32.mrf.mxu0
    %v1919 = vadd.f32 0.0, %v1918
    %v1920 = vpop.f32.mrf.mxu0
    %v1921 = vpop.f32.mrf.mxu0
    %v1922 = vadd.f32 0.0, %v1921
    %v1923 = vpop.f32.mrf.mxu0
    %1924 = vmatprep.mubr.bf16.mxu0 %v709
    %1925 = vmatmul.mubr.bf16.gmra.mxu0 %v708
    %v1926 = vpop.f32.mrf.mxu0
    %v1927 = vadd.f32 0.0, %v1926
    %v1928 = vpop.f32.mrf.mxu0
    %v1929 = vpop.f32.mrf.mxu0
    %v1930 = vadd.f32 0.0, %v1929
    %v1931 = vpop.f32.mrf.mxu0
    %1932 = vmatprep.mubr.bf16.mxu0 %v711
    %1933 = vmatmul.mubr.bf16.gmra.mxu0 %v710
    %v1934 = vpop.f32.mrf.mxu0
    %v1935 = vadd.f32 0.0, %v1934
    %v1936 = vpop.f32.mrf.mxu0
    %v1937 = vpop.f32.mrf.mxu0
    %v1938 = vadd.f32 0.0, %v1937
    %v1939 = vpop.f32.mrf.mxu0
    %1940 = vmatprep.mubr.bf16.mxu0 %v713
    %1941 = vmatmul.mubr.bf16.gmra.mxu0 %v712
    %v1942 = vpop.f32.mrf.mxu0
    %v1943 = vadd.f32 0.0, %v1942
    %v1944 = vpop.f32.mrf.mxu0
    %v1945 = vpop.f32.mrf.mxu0
    %v1946 = vadd.f32 0.0, %v1945
    %v1947 = vpop.f32.mrf.mxu0
    %1948 = vmatprep.mubr.bf16.mxu0 %v715
    %1949 = vmatmul.mubr.bf16.gmra.mxu0 %v714
    %v1950 = vpop.f32.mrf.mxu0
    %v1951 = vadd.f32 0.0, %v1950
    %v1952 = vpop.f32.mrf.mxu0
    %v1953 = vpop.f32.mrf.mxu0
    %v1954 = vadd.f32 0.0, %v1953
    %v1955 = vpop.f32.mrf.mxu0
    %1956 = vmatprep.mubr.bf16.mxu0 %v717
    %1957 = vmatmul.mubr.bf16.gmra.mxu0 %v716
    %v1958 = vpop.f32.mrf.mxu0
    %v1959 = vadd.f32 0.0, %v1958
    %v1960 = vpop.f32.mrf.mxu0
    %v1961 = vpop.f32.mrf.mxu0
    %v1962 = vadd.f32 0.0, %v1961
    %v1963 = vpop.f32.mrf.mxu0
    %1964 = vmatprep.mubr.bf16.mxu0 %v719
    %1965 = vmatmul.mubr.bf16.gmra.mxu0 %v718
    %v1966 = vpop.f32.mrf.mxu0
    %v1967 = vadd.f32 0.0, %v1966
    %v1968 = vpop.f32.mrf.mxu0
    %v1969 = vpop.f32.mrf.mxu0
    %v1970 = vadd.f32 0.0, %v1969
    %v1971 = vpop.f32.mrf.mxu0
    %1972 = vdwg.mxu0
    %v1973 = vadd.f32 %v1301, %v1719
    %v1974 = vadd.f32 %v1304, %v1722
    %v1975 = vadd.f32 %v1309, %v1727
    %v1976 = vadd.f32 %v1312, %v1730
    %v1977 = vadd.f32 %v1317, %v1735
    %v1978 = vadd.f32 %v1320, %v1738
    %v1979 = vadd.f32 %v1325, %v1743
    %v1980 = vadd.f32 %v1328, %v1746
    %v1981 = vadd.f32 %v1333, %v1751
    %v1982 = vadd.f32 %v1336, %v1754
    %v1983 = vadd.f32 %v1341, %v1759
    %v1984 = vadd.f32 %v1344, %v1762
    %v1985 = vadd.f32 %v1349, %v1767
    %v1986 = vadd.f32 %v1352, %v1770
    %v1987 = vadd.f32 %v1357, %v1775
    %v1988 = vadd.f32 %v1360, %v1778
    %v1989 = vadd.f32 %v1365, %v1783
    %v1990 = vadd.f32 %v1368, %v1786
    %v1991 = vadd.f32 %v1373, %v1791
    %v1992 = vadd.f32 %v1376, %v1794
    %v1993 = vadd.f32 %v1381, %v1799
    %v1994 = vadd.f32 %v1384, %v1802
    %v1995 = vadd.f32 %v1389, %v1807
    %v1996 = vadd.f32 %v1392, %v1810
    %v1997 = vadd.f32 %v1397, %v1815
    %v1998 = vadd.f32 %v1400, %v1818
    %v1999 = vadd.f32 %v1405, %v1823
    %v2000 = vadd.f32 %v1408, %v1826
    %v2001 = vadd.f32 %v1413, %v1831
    %v2002 = vadd.f32 %v1416, %v1834
    %v2003 = vadd.f32 %v1421, %v1839
    %v2004 = vadd.f32 %v1424, %v1842
    %v2005 = vadd.f32 %v1429, %v1847
    %v2006 = vadd.f32 %v1432, %v1850
    %v2007 = vadd.f32 %v1437, %v1855
    %v2008 = vadd.f32 %v1440, %v1858
    %v2009 = vadd.f32 %v1445, %v1863
    %v2010 = vadd.f32 %v1448, %v1866
    %v2011 = vadd.f32 %v1453, %v1871
    %v2012 = vadd.f32 %v1456, %v1874
    %v2013 = vadd.f32 %v1461, %v1879
    %v2014 = vadd.f32 %v1464, %v1882
    %v2015 = vadd.f32 %v1469, %v1887
    %v2016 = vadd.f32 %v1472, %v1890
    %v2017 = vadd.f32 %v1477, %v1895
    %v2018 = vadd.f32 %v1480, %v1898
    %v2019 = vadd.f32 %v1485, %v1903
    %v2020 = vadd.f32 %v1488, %v1906
    %v2021 = vadd.f32 %v1493, %v1911
    %v2022 = vadd.f32 %v1496, %v1914
    %v2023 = vadd.f32 %v1501, %v1919
    %v2024 = vadd.f32 %v1504, %v1922
    %v2025 = vadd.f32 %v1509, %v1927
    %v2026 = vadd.f32 %v1512, %v1930
    %v2027 = vadd.f32 %v1517, %v1935
    %v2028 = vadd.f32 %v1520, %v1938
    %v2029 = vadd.f32 %v1525, %v1943
    %v2030 = vadd.f32 %v1528, %v1946
    %v2031 = vadd.f32 %v1533, %v1951
    %v2032 = vadd.f32 %v1536, %v1954
    %v2033 = vadd.f32 %v1541, %v1959
    %v2034 = vadd.f32 %v1544, %v1962
    %v2035 = vadd.f32 %v1549, %v1967
    %v2036 = vadd.f32 %v1552, %v1970
    %2037 = vst [vmem:[#allocation2] sm:$0xff] %v1973
    %2038 = vst [vmem:[#allocation2 + $0x8] sm:$0xff] %v1974
    %2039 = vst [vmem:[#allocation2 + $0x10] sm:$0xff] %v1975
    %2040 = vst [vmem:[#allocation2 + $0x18] sm:$0xff] %v1976
    %2041 = vst [vmem:[#allocation2 + $0x20] sm:$0xff] %v1977
    %2042 = vst [vmem:[#allocation2 + $0x28] sm:$0xff] %v1978
    %2043 = vst [vmem:[#allocation2 + $0x30] sm:$0xff] %v1979
    %2044 = vst [vmem:[#allocation2 + $0x38] sm:$0xff] %v1980
    %2045 = vst [vmem:[#allocation2 + $0x40] sm:$0xff] %v1981
    %2046 = vst [vmem:[#allocation2 + $0x48] sm:$0xff] %v1982
    %2047 = vst [vmem:[#allocation2 + $0x50] sm:$0xff] %v1983
    %2048 = vst [vmem:[#allocation2 + $0x58] sm:$0xff] %v1984
    %2049 = vst [vmem:[#allocation2 + $0x60] sm:$0xff] %v1985
    %2050 = vst [vmem:[#allocation2 + $0x68] sm:$0xff] %v1986
    %2051 = vst [vmem:[#allocation2 + $0x70] sm:$0xff] %v1987
    %2052 = vst [vmem:[#allocation2 + $0x78] sm:$0xff] %v1988
    %2053 = vst [vmem:[#allocation2 + $0x80] sm:$0xff] %v1989
    %2054 = vst [vmem:[#allocation2 + $0x88] sm:$0xff] %v1990
    %2055 = vst [vmem:[#allocation2 + $0x90] sm:$0xff] %v1991
    %2056 = vst [vmem:[#allocation2 + $0x98] sm:$0xff] %v1992
    %2057 = vst [vmem:[#allocation2 + $0xa0] sm:$0xff] %v1993
    %2058 = vst [vmem:[#allocation2 + $0xa8] sm:$0xff] %v1994
    %2059 = vst [vmem:[#allocation2 + $0xb0] sm:$0xff] %v1995
    %2060 = vst [vmem:[#allocation2 + $0xb8] sm:$0xff] %v1996
    %2061 = vst [vmem:[#allocation2 + $0xc0] sm:$0xff] %v1997
    %2062 = vst [vmem:[#allocation2 + $0xc8] sm:$0xff] %v1998
    %2063 = vst [vmem:[#allocation2 + $0xd0] sm:$0xff] %v1999
    %2064 = vst [vmem:[#allocation2 + $0xd8] sm:$0xff] %v2000
    %2065 = vst [vmem:[#allocation2 + $0xe0] sm:$0xff] %v2001
    %2066 = vst [vmem:[#allocation2 + $0xe8] sm:$0xff] %v2002
    %2067 = vst [vmem:[#allocation2 + $0xf0] sm:$0xff] %v2003
    %2068 = vst [vmem:[#allocation2 + $0xf8] sm:$0xff] %v2004
    %2069 = vst [vmem:[#allocation2 + $0x100] sm:$0xff] %v2005
    %2070 = vst [vmem:[#allocation2 + $0x108] sm:$0xff] %v2006
    %2071 = vst [vmem:[#allocation2 + $0x110] sm:$0xff] %v2007
    %2072 = vst [vmem:[#allocation2 + $0x118] sm:$0xff] %v2008
    %2073 = vst [vmem:[#allocation2 + $0x120] sm:$0xff] %v2009
    %2074 = vst [vmem:[#allocation2 + $0x128] sm:$0xff] %v2010
    %2075 = vst [vmem:[#allocation2 + $0x130] sm:$0xff] %v2011
    %2076 = vst [vmem:[#allocation2 + $0x138] sm:$0xff] %v2012
    %2077 = vst [vmem:[#allocation2 + $0x140] sm:$0xff] %v2013
    %2078 = vst [vmem:[#allocation2 + $0x148] sm:$0xff] %v2014
    %2079 = vst [vmem:[#allocation2 + $0x150] sm:$0xff] %v2015
    %2080 = vst [vmem:[#allocation2 + $0x158] sm:$0xff] %v2016
    %2081 = vst [vmem:[#allocation2 + $0x160] sm:$0xff] %v2017
    %2082 = vst [vmem:[#allocation2 + $0x168] sm:$0xff] %v2018
    %2083 = vst [vmem:[#allocation2 + $0x170] sm:$0xff] %v2019
    %2084 = vst [vmem:[#allocation2 + $0x178] sm:$0xff] %v2020
    %2085 = vst [vmem:[#allocation2 + $0x180] sm:$0xff] %v2021
    %2086 = vst [vmem:[#allocation2 + $0x188] sm:$0xff] %v2022
    %2087 = vst [vmem:[#allocation2 + $0x190] sm:$0xff] %v2023
    %2088 = vst [vmem:[#allocation2 + $0x198] sm:$0xff] %v2024
    %2089 = vst [vmem:[#allocation2 + $0x1a0] sm:$0xff] %v2025
    %2090 = vst [vmem:[#allocation2 + $0x1a8] sm:$0xff] %v2026
    %2091 = vst [vmem:[#allocation2 + $0x1b0] sm:$0xff] %v2027
    %2092 = vst [vmem:[#allocation2 + $0x1b8] sm:$0xff] %v2028
    %2093 = vst [vmem:[#allocation2 + $0x1c0] sm:$0xff] %v2029
    %2094 = vst [vmem:[#allocation2 + $0x1c8] sm:$0xff] %v2030
    %2095 = vst [vmem:[#allocation2 + $0x1d0] sm:$0xff] %v2031
    %2096 = vst [vmem:[#allocation2 + $0x1d8] sm:$0xff] %v2032
    %2097 = vst [vmem:[#allocation2 + $0x1e0] sm:$0xff] %v2033
    %2098 = vst [vmem:[#allocation2 + $0x1e8] sm:$0xff] %v2034
    %2099 = vst [vmem:[#allocation2 + $0x1f0] sm:$0xff] %v2035
    %2100 = vst [vmem:[#allocation2 + $0x1f8] sm:$0xff] %v2036
    // Predicated region
    $region10: #{pixel_embedding.1} parent=1 // pred_check
      _
    $region11: #{pixel_embedding.1} parent=1 // pred_check_branch
      %2102 = sbr.rel (0) target = $region13
    $region12: #{pixel_embedding.1} parent=1 // pred_region
      %s2104 = ssub.s32 8192, 8192
      %2105 = vsyncadd [#allocation3], %s2104
      %s2106 = sshll.u32 [#allocation2], 4
      %s2107 = int_to_ptr.vmem [resolvable:$true] %s2106
      %2112 = dma.vmem_to_hbm [thread:$0]  %s2107, 8192, %s2, [#allocation3], 128, 128, 8
    $region13: #{pixel_embedding.1} parent=1 // pred_fallthru
      _
    // Predicated region
    $region14: #{pixel_embedding.1} parent=1 // pred_check
      _
    $region15: #{pixel_embedding.1} parent=1 // pred_check_branch
      %2114 = sbr.rel (0) target = $region17
    $region16: #{pixel_embedding.1} parent=1 // pred_region
      %2115 = dma.done [#allocation3], 8192
    $region17: #{pixel_embedding.1} parent=1 // pred_fallthru
      _
    %2116 = vsyncpa [#allocation3], 1

</llo_original>
